<compile_context>
chip_gen: v5e
topology: v5e:2x2
jax: 0.10.0
libtpu: 0.0.40
codegen_flags: <defaults>
</compile_context>

<pallas_src>
import jax
import jax.numpy as jnp
from jax.experimental import pallas as pl
from jax.experimental.pallas import tpu as pltpu


# ----------------------------------------------------------------------------
# Parameter construction (mirrors TargetNetwork.__init__ / _get_layer_data)
# ----------------------------------------------------------------------------
def build_target_network_params(weights, out_ch, tn_in_features, use_bias):
    """Split the flat `weights` vector exactly like the PyTorch module does."""

    def get_layer_data(start, end, shape):
        layer = {"weight": weights[start:end].reshape(shape[0], shape[1])}
        if use_bias:
            layer["bias"] = weights[end:end + shape[0]]
            end = end + shape[0]
        return layer, end

    layers = []
    layer, idx = get_layer_data(0, out_ch[0] * tn_in_features,
                                (out_ch[0], tn_in_features))
    layers.append(layer)
    for x in range(1, len(out_ch)):
        layer, idx = get_layer_data(idx, idx + out_ch[x - 1] * out_ch[x],
                                    (out_ch[x], out_ch[x - 1]))
        layers.append(layer)
    output, idx = get_layer_data(idx, idx + out_ch[-1] * 3, (3, out_ch[-1]))
    assert idx == weights.shape[0], "Incorrect TargetNetwork configuration"
    return layers, output


def total_weight_count(out_ch, tn_in_features, use_bias):
    dims = [tn_in_features] + list(out_ch) + [3]
    n = 0
    for i in range(len(dims) - 1):
        n += dims[i] * dims[i + 1]
        if use_bias:
            n += dims[i + 1]
    return n


# ----------------------------------------------------------------------------
# Pallas kernel: whole MLP hot path, batch-major (rows on sublanes)
# ----------------------------------------------------------------------------
def _make_kernel(num_hidden, use_bias, in_feat, first_layer_vpu):
    # ref order: x, [w1_t, (b1), w2_t, (b2), ..., w_out_t, (b_out)], o
    # weights are pre-transposed to (in, out) in the wrapper.
    def kernel(*refs):
        x_ref = refs[0]                                   # (tile_m, in_feat)
        o_ref = refs[-1]                                  # (tile_m, 3)
        params = refs[1:-1]
        step = 2 if use_bias else 1

        x = x_ref[...].astype(jnp.float32)                # (tile_m, in_feat)

        # ---- layer 1 ---------------------------------------------------
        w1t = params[0][...]                              # (in_feat, out0)
        if first_layer_vpu:
            # K=in_feat (tiny) contraction as VPU broadcast FMAs: avoids a
            # nearly-empty MXU pass + result-FIFO latency.
            h = x[:, 0:1] * w1t[0:1, :]
            for k in range(1, in_feat):
                h = h + x[:, k:k + 1] * w1t[k:k + 1, :]
        else:
            h = jnp.dot(x.astype(w1t.dtype), w1t,
                        preferred_element_type=jnp.float32)
        if use_bias:
            h = h + params[1][...]                        # (1, out0) f32
        h = jnp.maximum(h, 0.0)

        # ---- remaining hidden layers on the MXU (bf16 in, f32 acc) -----
        for l in range(1, num_hidden):
            w = params[l * step][...]                     # (in, out)
            h = jnp.dot(h.astype(w.dtype), w,
                        preferred_element_type=jnp.float32)
            if use_bias:
                h = h + params[l * step + 1][...]         # (1, out) f32
            h = jnp.maximum(h, 0.0)

        # ---- output layer ----------------------------------------------
        w_out = params[num_hidden * step][...]            # (last, 3)
        y = jnp.dot(h.astype(w_out.dtype), w_out,
                    preferred_element_type=jnp.float32)
        if use_bias:
            y = y + params[num_hidden * step + 1][...]    # (1, 3) f32
        o_ref[...] = y.astype(o_ref.dtype)

    return kernel


def _pick_tile_m(n):
    # Big tiles to amortize the ~0.35 us/grid-step cost, but keep >= 2 grid
    # steps so both v7x TensorCores are fed.  256-aligned (128 suffices on
    # v5e, 256 is harmless there).
    half = pl.cdiv(n, 2)
    tm = ((half + 255) // 256) * 256
    return max(256, min(4096, tm))


def target_network_forward(x, layers, output, use_bias, *,
                           tile_m=None, use_bf16=True):
    """x: (N, tn_in_features) float32 -> (N, 3) float32."""
    n, in_feat = x.shape
    num_hidden = len(layers)
    if tile_m is None:
        tile_m = _pick_tile_m(n)

    first_layer_vpu = in_feat <= 8
    mxu_dtype = jnp.bfloat16 if use_bf16 else jnp.float32

    param_arrays = []
    param_specs = []

    def add_param(a):
        param_arrays.append(a)
        param_specs.append(pl.BlockSpec(a.shape, lambda i: (0, 0)))

    all_layers = list(layers) + [output]
    for li, layer in enumerate(all_layers):
        w_t = jnp.transpose(layer["weight"])              # (in, out), tiny
        if li == 0 and first_layer_vpu:
            add_param(w_t.astype(jnp.float32))            # VPU layer stays f32
        else:
            add_param(w_t.astype(mxu_dtype))
        if use_bias:
            add_param(layer["bias"].reshape(1, -1).astype(jnp.float32))

    kernel = _make_kernel(num_hidden, use_bias, in_feat, first_layer_vpu)

    # Advisory cost estimate for XLA's scheduler.
    dims = [in_feat] + [l["weight"].shape[0] for l in layers] + [3]
    flops = 2 * n * sum(dims[i] * dims[i + 1] for i in range(len(dims) - 1))
    param_bytes = sum(int(a.size) * a.dtype.itemsize for a in param_arrays)
    cost = pl.CostEstimate(flops=int(flops), transcendentals=0,
                           bytes_accessed=int(n * (in_feat + 3) * 4
                                              + param_bytes))

    grid = (pl.cdiv(n, tile_m),)                          # ragged tail handled
                                                          # by Pallas (no pad)
    y = pl.pallas_call(
        kernel,
        out_shape=jax.ShapeDtypeStruct((n, 3), jnp.float32),
        grid_spec=pltpu.PrefetchScalarGridSpec(
            num_scalar_prefetch=0,
            grid=grid,
            in_specs=[pl.BlockSpec((tile_m, in_feat), lambda i: (i, 0))]
                     + param_specs,
            out_specs=pl.BlockSpec((tile_m, 3), lambda i: (i, 0)),
        ),
        compiler_params=pltpu.CompilerParams(
            dimension_semantics=("parallel",)),
        cost_estimate=cost,
    )(x, *param_arrays)
    return y


# ----------------------------------------------------------------------------
# Pure-JAX reference (mirrors the PyTorch forward exactly)
# ----------------------------------------------------------------------------
def target_network_ref(x, layers, output, use_bias):
    h = x
    for layer in layers:
        h = h @ layer["weight"].T
        if use_bias:
            h = h + layer["bias"]
        h = jnp.maximum(h, 0.0)
    y = h @ output["weight"].T
    if use_bias:
        y = y + output["bias"]
    return y


if __name__ == "__main__":
    # Config consistent with the module's __init__.
    tn_in_features = 3
    use_bias = True
    out_ch = [32, 64, 32]

    key = jax.random.PRNGKey(0)
    k_w, k_x = jax.random.split(key)

    n_weights = total_weight_count(out_ch, tn_in_features, use_bias)
    flat_weights = jax.random.normal(k_w, (n_weights,), jnp.float32) * 0.1
    layers, output = build_target_network_params(
        flat_weights, out_ch, tn_in_features, use_bias)

    # Deliberately NOT a multiple of the tile: exercises the ragged last block
    # (no wrapper-side padding).  Auto tile_m=512 -> 2 grid steps.
    n_points = 1000
    x = jax.random.normal(k_x, (n_points, tn_in_features), jnp.float32)

    y_ref = target_network_ref(x, layers, output, use_bias)

    # f32 path: exact check of the kernel math / layout.
    y_f32 = jax.block_until_ready(
        target_network_forward(x, layers, output, use_bias, use_bf16=False))
    assert y_f32.shape == (n_points, 3)
    assert jnp.allclose(y_f32, y_ref, atol=1e-4, rtol=1e-4), "f32 mismatch"

    # Default bf16-MXU path: looser tolerance (weight/activation rounding).
    y_bf16 = jax.block_until_ready(
        target_network_forward(x, layers, output, use_bias))
    assert y_bf16.shape == (n_points, 3)
    assert jnp.allclose(y_bf16, y_ref, atol=3e-2, rtol=3e-2), "bf16 mismatch"

    print("KERNEL_OK")
</pallas_src>

<mosaic_0001>
module attributes {stable_mosaic.version = 11 : i64} {
  func.func @kernel(%arg0: i32, %arg1: memref<512x3xf32, #tpu.memory_space<vmem>>, %arg2: memref<3x32xf32, #tpu.memory_space<vmem>>, %arg3: memref<1x32xf32, #tpu.memory_space<vmem>>, %arg4: memref<32x64xf32, #tpu.memory_space<vmem>>, %arg5: memref<1x64xf32, #tpu.memory_space<vmem>>, %arg6: memref<64x32xf32, #tpu.memory_space<vmem>>, %arg7: memref<1x32xf32, #tpu.memory_space<vmem>>, %arg8: memref<32x3xf32, #tpu.memory_space<vmem>>, %arg9: memref<1x3xf32, #tpu.memory_space<vmem>>, %arg10: memref<512x3xf32, #tpu.memory_space<vmem>>) attributes {dimension_semantics = [#tpu.dimension_semantics<parallel>], iteration_bounds = array<i64: 2>, scalar_prefetch = 0 : i64, scratch_operands = 0 : i64, tpu.core_type = #tpu.core_type<tc>, window_params = [{transform_indices = @transform_0, window_bounds = array<i64: 512, 3>}, {pipeline_mode = #tpu.pipeline_mode<synchronous>, transform_indices = @transform_1, window_bounds = array<i64: 3, 32>}, {pipeline_mode = #tpu.pipeline_mode<synchronous>, transform_indices = @transform_2, window_bounds = array<i64: 1, 32>}, {pipeline_mode = #tpu.pipeline_mode<synchronous>, transform_indices = @transform_3, window_bounds = array<i64: 32, 64>}, {pipeline_mode = #tpu.pipeline_mode<synchronous>, transform_indices = @transform_4, window_bounds = array<i64: 1, 64>}, {pipeline_mode = #tpu.pipeline_mode<synchronous>, transform_indices = @transform_5, window_bounds = array<i64: 64, 32>}, {pipeline_mode = #tpu.pipeline_mode<synchronous>, transform_indices = @transform_6, window_bounds = array<i64: 1, 32>}, {pipeline_mode = #tpu.pipeline_mode<synchronous>, transform_indices = @transform_7, window_bounds = array<i64: 32, 3>}, {pipeline_mode = #tpu.pipeline_mode<synchronous>, transform_indices = @transform_8, window_bounds = array<i64: 1, 3>}, {transform_indices = @transform_9, window_bounds = array<i64: 512, 3>}]} {
    %c0 = arith.constant 0 : index
    %c0_0 = arith.constant 0 : index
    %0 = vector.load %arg1[%c0, %c0_0] : memref<512x3xf32, #tpu.memory_space<vmem>>, vector<512x3xf32>
    %c0_1 = arith.constant 0 : index
    %c0_2 = arith.constant 0 : index
    %1 = vector.load %arg2[%c0_1, %c0_2] : memref<3x32xf32, #tpu.memory_space<vmem>>, vector<3x32xf32>
    %2 = vector.extract_strided_slice %0 {offsets = [0, 0], sizes = [512, 1], strides = [1, 1]} : vector<512x3xf32> to vector<512x1xf32>
    %3 = vector.extract_strided_slice %1 {offsets = [0, 0], sizes = [1, 32], strides = [1, 1]} : vector<3x32xf32> to vector<1x32xf32>
    %4 = vector.broadcast %2 : vector<512x1xf32> to vector<512x32xf32>
    %5 = vector.broadcast %3 : vector<1x32xf32> to vector<512x32xf32>
    %6 = arith.mulf %4, %5 : vector<512x32xf32>
    %7 = vector.extract_strided_slice %0 {offsets = [0, 1], sizes = [512, 1], strides = [1, 1]} : vector<512x3xf32> to vector<512x1xf32>
    %8 = vector.extract_strided_slice %1 {offsets = [1, 0], sizes = [1, 32], strides = [1, 1]} : vector<3x32xf32> to vector<1x32xf32>
    %9 = vector.broadcast %7 : vector<512x1xf32> to vector<512x32xf32>
    %10 = vector.broadcast %8 : vector<1x32xf32> to vector<512x32xf32>
    %11 = arith.mulf %9, %10 : vector<512x32xf32>
    %12 = arith.addf %6, %11 : vector<512x32xf32>
    %13 = vector.extract_strided_slice %0 {offsets = [0, 2], sizes = [512, 1], strides = [1, 1]} : vector<512x3xf32> to vector<512x1xf32>
    %14 = vector.extract_strided_slice %1 {offsets = [2, 0], sizes = [1, 32], strides = [1, 1]} : vector<3x32xf32> to vector<1x32xf32>
    %15 = vector.broadcast %13 : vector<512x1xf32> to vector<512x32xf32>
    %16 = vector.broadcast %14 : vector<1x32xf32> to vector<512x32xf32>
    %17 = arith.mulf %15, %16 : vector<512x32xf32>
    %18 = arith.addf %12, %17 : vector<512x32xf32>
    %c0_3 = arith.constant 0 : index
    %c0_4 = arith.constant 0 : index
    %19 = vector.load %arg3[%c0_3, %c0_4] : memref<1x32xf32, #tpu.memory_space<vmem>>, vector<1x32xf32>
    %20 = vector.broadcast %19 : vector<1x32xf32> to vector<512x32xf32>
    %21 = arith.addf %18, %20 : vector<512x32xf32>
    %cst = arith.constant 0.000000e+00 : f32
    %22 = vector.broadcast %cst : f32 to vector<512x32xf32>
    %23 = arith.maximumf %21, %22 : vector<512x32xf32>
    %c0_5 = arith.constant 0 : index
    %c0_6 = arith.constant 0 : index
    %24 = vector.load %arg4[%c0_5, %c0_6] : memref<32x64xf32, #tpu.memory_space<vmem>>, vector<32x64xf32>
    %cst_7 = arith.constant dense<0.000000e+00> : vector<512x64xf32>
    %25 = tpu.matmul %23, %24, %cst_7 {dimension_numbers = #tpu.dot_dimension_numbers<[1], [0], [0], [1], [0, 0, 1, 1], [], []>} : vector<512x32xf32>, vector<32x64xf32>, vector<512x64xf32> -> vector<512x64xf32>
    %c0_8 = arith.constant 0 : index
    %c0_9 = arith.constant 0 : index
    %26 = vector.load %arg5[%c0_8, %c0_9] : memref<1x64xf32, #tpu.memory_space<vmem>>, vector<1x64xf32>
    %27 = vector.broadcast %26 : vector<1x64xf32> to vector<512x64xf32>
    %28 = arith.addf %25, %27 : vector<512x64xf32>
    %cst_10 = arith.constant 0.000000e+00 : f32
    %29 = vector.broadcast %cst_10 : f32 to vector<512x64xf32>
    %30 = arith.maximumf %28, %29 : vector<512x64xf32>
    %c0_11 = arith.constant 0 : index
    %c0_12 = arith.constant 0 : index
    %31 = vector.load %arg6[%c0_11, %c0_12] : memref<64x32xf32, #tpu.memory_space<vmem>>, vector<64x32xf32>
    %cst_13 = arith.constant dense<0.000000e+00> : vector<512x32xf32>
    %32 = tpu.matmul %30, %31, %cst_13 {dimension_numbers = #tpu.dot_dimension_numbers<[1], [0], [0], [1], [0, 0, 1, 1], [], []>} : vector<512x64xf32>, vector<64x32xf32>, vector<512x32xf32> -> vector<512x32xf32>
    %c0_14 = arith.constant 0 : index
    %c0_15 = arith.constant 0 : index
    %33 = vector.load %arg7[%c0_14, %c0_15] : memref<1x32xf32, #tpu.memory_space<vmem>>, vector<1x32xf32>
    %34 = vector.broadcast %33 : vector<1x32xf32> to vector<512x32xf32>
    %35 = arith.addf %32, %34 : vector<512x32xf32>
    %cst_16 = arith.constant 0.000000e+00 : f32
    %36 = vector.broadcast %cst_16 : f32 to vector<512x32xf32>
    %37 = arith.maximumf %35, %36 : vector<512x32xf32>
    %c0_17 = arith.constant 0 : index
    %c0_18 = arith.constant 0 : index
    %38 = vector.load %arg8[%c0_17, %c0_18] : memref<32x3xf32, #tpu.memory_space<vmem>>, vector<32x3xf32>
    %cst_19 = arith.constant dense<0.000000e+00> : vector<512x3xf32>
    %39 = tpu.matmul %37, %38, %cst_19 {dimension_numbers = #tpu.dot_dimension_numbers<[1], [0], [0], [1], [0, 0, 1, 1], [], []>} : vector<512x32xf32>, vector<32x3xf32>, vector<512x3xf32> -> vector<512x3xf32>
    %c0_20 = arith.constant 0 : index
    %c0_21 = arith.constant 0 : index
    %40 = vector.load %arg9[%c0_20, %c0_21] : memref<1x3xf32, #tpu.memory_space<vmem>>, vector<1x3xf32>
    %41 = vector.broadcast %40 : vector<1x3xf32> to vector<512x3xf32>
    %42 = arith.addf %39, %41 : vector<512x3xf32>
    %c0_22 = arith.constant 0 : index
    %c0_23 = arith.constant 0 : index
    %43 = vector.load %arg10[%c0_22, %c0_23] : memref<512x3xf32, #tpu.memory_space<vmem>>, vector<512x3xf32>
    tpu.vector_store %arg10[%c0_22, %c0_23], %42 {strides = array<i32>} : memref<512x3xf32, #tpu.memory_space<vmem>>, vector<512x3xf32>,
    return
  }
  func.func @transform_0(%arg0: i32) -> (i32, i32) {
    %c0_i32 = arith.constant 0 : i32
    %c0_i32_0 = arith.constant 0 : i32
    return %arg0, %c0_i32 : i32, i32
  }
  func.func @transform_1(%arg0: i32) -> (i32, i32) {
    %c0_i32 = arith.constant 0 : i32
    %c0_i32_0 = arith.constant 0 : i32
    %c0_i32_1 = arith.constant 0 : i32
    return %c0_i32, %c0_i32_0 : i32, i32
  }
  func.func @transform_2(%arg0: i32) -> (i32, i32) {
    %c0_i32 = arith.constant 0 : i32
    %c0_i32_0 = arith.constant 0 : i32
    %c0_i32_1 = arith.constant 0 : i32
    return %c0_i32, %c0_i32_0 : i32, i32
  }
  func.func @transform_3(%arg0: i32) -> (i32, i32) {
    %c0_i32 = arith.constant 0 : i32
    %c0_i32_0 = arith.constant 0 : i32
    %c0_i32_1 = arith.constant 0 : i32
    return %c0_i32, %c0_i32_0 : i32, i32
  }
  func.func @transform_4(%arg0: i32) -> (i32, i32) {
    %c0_i32 = arith.constant 0 : i32
    %c0_i32_0 = arith.constant 0 : i32
    %c0_i32_1 = arith.constant 0 : i32
    return %c0_i32, %c0_i32_0 : i32, i32
  }
  func.func @transform_5(%arg0: i32) -> (i32, i32) {
    %c0_i32 = arith.constant 0 : i32
    %c0_i32_0 = arith.constant 0 : i32
    %c0_i32_1 = arith.constant 0 : i32
    return %c0_i32, %c0_i32_0 : i32, i32
  }
  func.func @transform_6(%arg0: i32) -> (i32, i32) {
    %c0_i32 = arith.constant 0 : i32
    %c0_i32_0 = arith.constant 0 : i32
    %c0_i32_1 = arith.constant 0 : i32
    return %c0_i32, %c0_i32_0 : i32, i32
  }
  func.func @transform_7(%arg0: i32) -> (i32, i32) {
    %c0_i32 = arith.constant 0 : i32
    %c0_i32_0 = arith.constant 0 : i32
    %c0_i32_1 = arith.constant 0 : i32
    return %c0_i32, %c0_i32_0 : i32, i32
  }
  func.func @transform_8(%arg0: i32) -> (i32, i32) {
    %c0_i32 = arith.constant 0 : i32
    %c0_i32_0 = arith.constant 0 : i32
    %c0_i32_1 = arith.constant 0 : i32
    return %c0_i32, %c0_i32_0 : i32, i32
  }
  func.func @transform_9(%arg0: i32) -> (i32, i32) {
    %c0_i32 = arith.constant 0 : i32
    %c0_i32_0 = arith.constant 0 : i32
    return %arg0, %c0_i32 : i32, i32
  }
}

</mosaic_0001>

<llo_original>
// kernel: tpu_custom_call.1
$region0: #{tpu_custom_call.1}
  #allocation0 [shape = 'u32[]', space=smem, size = 0x4, offset = 0x4, fixed_abs, tag = 'smem constant byte address 0x4 - core index']
  #allocation1 [shape = 'u32[72,128]{1,0:T(1,128)}', space=vmem, size = 0x9000, scoped, tag = 'internal scratch']
  %s0 = inlined_call_operand.vmem [shape: f32[1000,3], index: 0, kind: input, shape index: {}]
  %s1 = inlined_call_operand.vmem [shape: f32[3,32], index: 1, kind: input, shape index: {}]
  %s2 = inlined_call_operand.vmem [shape: f32[1,32], index: 2, kind: input, shape index: {}]
  %s3 = inlined_call_operand.vmem [shape: f32[32,64], index: 3, kind: input, shape index: {}]
  %s4 = inlined_call_operand.vmem [shape: f32[1,64], index: 4, kind: input, shape index: {}]
  %s5 = inlined_call_operand.vmem [shape: f32[64,32], index: 5, kind: input, shape index: {}]
  %s6 = inlined_call_operand.vmem [shape: f32[1,32], index: 6, kind: input, shape index: {}]
  %s7 = inlined_call_operand.vmem [shape: f32[32,3], index: 7, kind: input, shape index: {}]
  %s8 = inlined_call_operand.vmem [shape: f32[1,3], index: 8, kind: input, shape index: {}]
  %s9 = inlined_call_operand.vmem [shape: f32[1000,3], index: 9, kind: output, shape index: {}]
  %s10 = sld [smem:[#allocation0]]
  $region117: #{tpu_custom_call.1} parent=0
    _
  %s12 = ssub.s32 1, %s10
  %s13 = scalar_select 0, %s12, %s10
  $region1: #{tpu_custom_call.1} parent=0
    #allocation2 [shape = 'u8[524288]{0}', space=vmem, size = 0x80000, scoped, tag = 'output window, operand 0']
    loop: start=0, step=1, limit=4
    $region2: #{tpu_custom_call.1} parent=1 // loop_pre_header
      _
    $region3: #{tpu_custom_call.1} parent=1 // loop_header
      %s15 = sphi 0, %s19
      %p16 = scmp.ge.s32.totalorder %s15, 4
      %s25 = sphi 0, %s27
      %s28 = sphi 0, %s25
      %s29 = sphi 0, %s28
      %s45 = sphi 0, %s29
      %s49 = sphi 0, %s49
      %s51 = sphi 0, %s49
      %s52 = sphi 0, %s51
      %s66 = sphi 0, %s52
      %s70 = sphi 0, %s70
      %s72 = sphi 0, %s70
      %s73 = sphi 0, %s72
      %s87 = sphi 0, %s73
      %s91 = sphi 0, %s91
      %s93 = sphi 0, %s91
      %s94 = sphi 0, %s93
      %s108 = sphi 0, %s94
      %s112 = sphi 0, %s112
      %s114 = sphi 0, %s112
      %s115 = sphi 0, %s114
      %s129 = sphi 0, %s115
      %s133 = sphi 0, %s133
      %s135 = sphi 0, %s133
      %s136 = sphi 0, %s135
      %s150 = sphi 0, %s136
      %s154 = sphi 0, %s154
      %s156 = sphi 0, %s154
      %s157 = sphi 0, %s156
      %s171 = sphi 0, %s157
      %s175 = sphi 0, %s175
      %s177 = sphi 0, %s175
      %s178 = sphi 0, %s177
      %s192 = sphi 0, %s178
      %s196 = sphi 0, %s196
      %s198 = sphi 0, %s196
      %s199 = sphi 0, %s198
      %s213 = sphi 0, %s199
      %s219 = sphi 0, %s221
      %s222 = sphi 0, %s219
      %s223 = sphi 0, %s222
      %s239 = sphi 0, %s223
    $region4: #{tpu_custom_call.1} parent=1 // loop_header_branch
      %18 = sbr.rel (%p16) target = $region8
    $region5: #{tpu_custom_call.1} parent=1 // loop_body
      %s20 = ssub.s32 %s15, 1
      %s21 = ssub.s32 %s15, 2
      %s22 = sadd.s32 %s15, 1
      %s23 = ssub.s32 %s15, %s22
      %p24 = scmp.eq.s32.totalorder %s23, 0
      %s26 = sadd.s32 %s25, 1
      %s27 = scalar_select %p24, %s25, %s26
      %p30 = pneg %p24
      %p31 = scmp.eq.s32.totalorder %s15, 1
      %p32 = por %p30, %p31
      %p33 = scmp.ne.s32.totalorder %s25, %s28
      %p34 = scmp.eq.s32.totalorder %s15, 0
      %p35 = por %p33, %p34
      %p36 = scmp.ne.s32.totalorder %s25, %s28
      %p37 = scmp.eq.s32.totalorder %s20, 1
      %p38 = por %p36, %p37
      %p39 = scmp.ne.s32.totalorder %s28, %s29
      %p40 = scmp.eq.s32.totalorder %s20, 0
      %p41 = por %p39, %p40
      %p42 = scmp.ne.s32.totalorder %s28, %s29
      %p43 = scmp.eq.s32.totalorder %s21, 1
      %p44 = por %p42, %p43
      %p46 = scmp.ne.s32.totalorder %s29, %s45
      %p47 = scmp.eq.s32.totalorder %s21, 0
      %p48 = por %p46, %p47
      %s50 = sadd.s32 %s49, 1
      %p53 = scmp.eq.s32.totalorder %s15, 1
      %p54 = scmp.ne.s32.totalorder %s49, %s51
      %p55 = scmp.eq.s32.totalorder %s15, 0
      %p56 = por %p54, %p55
      %p57 = scmp.ne.s32.totalorder %s49, %s51
      %p58 = scmp.eq.s32.totalorder %s20, 1
      %p59 = por %p57, %p58
      %p60 = scmp.ne.s32.totalorder %s51, %s52
      %p61 = scmp.eq.s32.totalorder %s20, 0
      %p62 = por %p60, %p61
      %p63 = scmp.ne.s32.totalorder %s51, %s52
      %p64 = scmp.eq.s32.totalorder %s21, 1
      %p65 = por %p63, %p64
      %p67 = scmp.ne.s32.totalorder %s52, %s66
      %p68 = scmp.eq.s32.totalorder %s21, 0
      %p69 = por %p67, %p68
      %s71 = sadd.s32 %s70, 1
      %p74 = scmp.eq.s32.totalorder %s15, 1
      %p75 = scmp.ne.s32.totalorder %s70, %s72
      %p76 = scmp.eq.s32.totalorder %s15, 0
      %p77 = por %p75, %p76
      %p78 = scmp.ne.s32.totalorder %s70, %s72
      %p79 = scmp.eq.s32.totalorder %s20, 1
      %p80 = por %p78, %p79
      %p81 = scmp.ne.s32.totalorder %s72, %s73
      %p82 = scmp.eq.s32.totalorder %s20, 0
      %p83 = por %p81, %p82
      %p84 = scmp.ne.s32.totalorder %s72, %s73
      %p85 = scmp.eq.s32.totalorder %s21, 1
      %p86 = por %p84, %p85
      %p88 = scmp.ne.s32.totalorder %s73, %s87
      %p89 = scmp.eq.s32.totalorder %s21, 0
      %p90 = por %p88, %p89
      %s92 = sadd.s32 %s91, 1
      %p95 = scmp.eq.s32.totalorder %s15, 1
      %p96 = scmp.ne.s32.totalorder %s91, %s93
      %p97 = scmp.eq.s32.totalorder %s15, 0
      %p98 = por %p96, %p97
      %p99 = scmp.ne.s32.totalorder %s91, %s93
      %p100 = scmp.eq.s32.totalorder %s20, 1
      %p101 = por %p99, %p100
      %p102 = scmp.ne.s32.totalorder %s93, %s94
      %p103 = scmp.eq.s32.totalorder %s20, 0
      %p104 = por %p102, %p103
      %p105 = scmp.ne.s32.totalorder %s93, %s94
      %p106 = scmp.eq.s32.totalorder %s21, 1
      %p107 = por %p105, %p106
      %p109 = scmp.ne.s32.totalorder %s94, %s108
      %p110 = scmp.eq.s32.totalorder %s21, 0
      %p111 = por %p109, %p110
      %s113 = sadd.s32 %s112, 1
      %p116 = scmp.eq.s32.totalorder %s15, 1
      %p117 = scmp.ne.s32.totalorder %s112, %s114
      %p118 = scmp.eq.s32.totalorder %s15, 0
      %p119 = por %p117, %p118
      %p120 = scmp.ne.s32.totalorder %s112, %s114
      %p121 = scmp.eq.s32.totalorder %s20, 1
      %p122 = por %p120, %p121
      %p123 = scmp.ne.s32.totalorder %s114, %s115
      %p124 = scmp.eq.s32.totalorder %s20, 0
      %p125 = por %p123, %p124
      %p126 = scmp.ne.s32.totalorder %s114, %s115
      %p127 = scmp.eq.s32.totalorder %s21, 1
      %p128 = por %p126, %p127
      %p130 = scmp.ne.s32.totalorder %s115, %s129
      %p131 = scmp.eq.s32.totalorder %s21, 0
      %p132 = por %p130, %p131
      %s134 = sadd.s32 %s133, 1
      %p137 = scmp.eq.s32.totalorder %s15, 1
      %p138 = scmp.ne.s32.totalorder %s133, %s135
      %p139 = scmp.eq.s32.totalorder %s15, 0
      %p140 = por %p138, %p139
      %p141 = scmp.ne.s32.totalorder %s133, %s135
      %p142 = scmp.eq.s32.totalorder %s20, 1
      %p143 = por %p141, %p142
      %p144 = scmp.ne.s32.totalorder %s135, %s136
      %p145 = scmp.eq.s32.totalorder %s20, 0
      %p146 = por %p144, %p145
      %p147 = scmp.ne.s32.totalorder %s135, %s136
      %p148 = scmp.eq.s32.totalorder %s21, 1
      %p149 = por %p147, %p148
      %p151 = scmp.ne.s32.totalorder %s136, %s150
      %p152 = scmp.eq.s32.totalorder %s21, 0
      %p153 = por %p151, %p152
      %s155 = sadd.s32 %s154, 1
      %p158 = scmp.eq.s32.totalorder %s15, 1
      %p159 = scmp.ne.s32.totalorder %s154, %s156
      %p160 = scmp.eq.s32.totalorder %s15, 0
      %p161 = por %p159, %p160
      %p162 = scmp.ne.s32.totalorder %s154, %s156
      %p163 = scmp.eq.s32.totalorder %s20, 1
      %p164 = por %p162, %p163
      %p165 = scmp.ne.s32.totalorder %s156, %s157
      %p166 = scmp.eq.s32.totalorder %s20, 0
      %p167 = por %p165, %p166
      %p168 = scmp.ne.s32.totalorder %s156, %s157
      %p169 = scmp.eq.s32.totalorder %s21, 1
      %p170 = por %p168, %p169
      %p172 = scmp.ne.s32.totalorder %s157, %s171
      %p173 = scmp.eq.s32.totalorder %s21, 0
      %p174 = por %p172, %p173
      %s176 = sadd.s32 %s175, 1
      %p179 = scmp.eq.s32.totalorder %s15, 1
      %p180 = scmp.ne.s32.totalorder %s175, %s177
      %p181 = scmp.eq.s32.totalorder %s15, 0
      %p182 = por %p180, %p181
      %p183 = scmp.ne.s32.totalorder %s175, %s177
      %p184 = scmp.eq.s32.totalorder %s20, 1
      %p185 = por %p183, %p184
      %p186 = scmp.ne.s32.totalorder %s177, %s178
      %p187 = scmp.eq.s32.totalorder %s20, 0
      %p188 = por %p186, %p187
      %p189 = scmp.ne.s32.totalorder %s177, %s178
      %p190 = scmp.eq.s32.totalorder %s21, 1
      %p191 = por %p189, %p190
      %p193 = scmp.ne.s32.totalorder %s178, %s192
      %p194 = scmp.eq.s32.totalorder %s21, 0
      %p195 = por %p193, %p194
      %s197 = sadd.s32 %s196, 1
      %p200 = scmp.eq.s32.totalorder %s15, 1
      %p201 = scmp.ne.s32.totalorder %s196, %s198
      %p202 = scmp.eq.s32.totalorder %s15, 0
      %p203 = por %p201, %p202
      %p204 = scmp.ne.s32.totalorder %s196, %s198
      %p205 = scmp.eq.s32.totalorder %s20, 1
      %p206 = por %p204, %p205
      %p207 = scmp.ne.s32.totalorder %s198, %s199
      %p208 = scmp.eq.s32.totalorder %s20, 0
      %p209 = por %p207, %p208
      %p210 = scmp.ne.s32.totalorder %s198, %s199
      %p211 = scmp.eq.s32.totalorder %s21, 1
      %p212 = por %p210, %p211
      %p214 = scmp.ne.s32.totalorder %s199, %s213
      %p215 = scmp.eq.s32.totalorder %s21, 0
      %p216 = por %p214, %p215
      %s217 = ssub.s32 %s15, %s22
      %p218 = scmp.eq.s32.totalorder %s217, 0
      %s220 = sadd.s32 %s219, 1
      %s221 = scalar_select %p218, %s219, %s220
      %p224 = pneg %p218
      %p225 = scmp.eq.s32.totalorder %s15, 1
      %p226 = por %p224, %p225
      %p227 = scmp.ne.s32.totalorder %s219, %s222
      %p228 = scmp.eq.s32.totalorder %s15, 0
      %p229 = por %p227, %p228
      %p230 = scmp.ne.s32.totalorder %s219, %s222
      %p231 = scmp.eq.s32.totalorder %s20, 1
      %p232 = por %p230, %p231
      %p233 = scmp.ne.s32.totalorder %s222, %s223
      %p234 = scmp.eq.s32.totalorder %s20, 0
      %p235 = por %p233, %p234
      %p236 = scmp.ne.s32.totalorder %s222, %s223
      %p237 = scmp.eq.s32.totalorder %s21, 1
      %p238 = por %p236, %p237
      %p240 = scmp.ne.s32.totalorder %s223, %s239
      %p241 = scmp.eq.s32.totalorder %s21, 0
      %p242 = por %p240, %p241
      %p243 = scmp.le.s32.totalorder 1, %s15
      %p244 = scmp.lt.s32.totalorder %s15, 3
      %p245 = pnand %p243, %p244
      %p246 = pneg %p245
      // Predicated region
      $region9: #{tpu_custom_call.1} parent=5 // pred_check
        _
      $region10: #{tpu_custom_call.1} parent=5 // pred_check_branch
        %248 = sbr.rel (%p245) target = $region12
      $region11: #{tpu_custom_call.1} parent=5 // pred_region
        %s249 = ssub.s32 %s15, 1
        // Predicated region
        $region13: #{tpu_custom_call.1} parent=11 // pred_check
          %p250 = pneg %p62
        $region14: #{tpu_custom_call.1} parent=11 // pred_check_branch
          %252 = sbr.rel (%p250) target = $region16
        $region15: #{tpu_custom_call.1} parent=11 // pred_region
          _
        $region16: #{tpu_custom_call.1} parent=11 // pred_fallthru
          _
        // Predicated region
        $region17: #{tpu_custom_call.1} parent=11 // pred_check
          %p253 = pneg %p83
        $region18: #{tpu_custom_call.1} parent=11 // pred_check_branch
          %255 = sbr.rel (%p253) target = $region20
        $region19: #{tpu_custom_call.1} parent=11 // pred_region
          _
        $region20: #{tpu_custom_call.1} parent=11 // pred_fallthru
          _
        // Predicated region
        $region21: #{tpu_custom_call.1} parent=11 // pred_check
          %p256 = pneg %p104
        $region22: #{tpu_custom_call.1} parent=11 // pred_check_branch
          %258 = sbr.rel (%p256) target = $region24
        $region23: #{tpu_custom_call.1} parent=11 // pred_region
          _
        $region24: #{tpu_custom_call.1} parent=11 // pred_fallthru
          _
        // Predicated region
        $region25: #{tpu_custom_call.1} parent=11 // pred_check
          %p259 = pneg %p125
        $region26: #{tpu_custom_call.1} parent=11 // pred_check_branch
          %261 = sbr.rel (%p259) target = $region28
        $region27: #{tpu_custom_call.1} parent=11 // pred_region
          _
        $region28: #{tpu_custom_call.1} parent=11 // pred_fallthru
          _
        // Predicated region
        $region29: #{tpu_custom_call.1} parent=11 // pred_check
          %p262 = pneg %p146
        $region30: #{tpu_custom_call.1} parent=11 // pred_check_branch
          %264 = sbr.rel (%p262) target = $region32
        $region31: #{tpu_custom_call.1} parent=11 // pred_region
          _
        $region32: #{tpu_custom_call.1} parent=11 // pred_fallthru
          _
        // Predicated region
        $region33: #{tpu_custom_call.1} parent=11 // pred_check
          %p265 = pneg %p167
        $region34: #{tpu_custom_call.1} parent=11 // pred_check_branch
          %267 = sbr.rel (%p265) target = $region36
        $region35: #{tpu_custom_call.1} parent=11 // pred_region
          _
        $region36: #{tpu_custom_call.1} parent=11 // pred_fallthru
          _
        // Predicated region
        $region37: #{tpu_custom_call.1} parent=11 // pred_check
          %p268 = pneg %p188
        $region38: #{tpu_custom_call.1} parent=11 // pred_check_branch
          %270 = sbr.rel (%p268) target = $region40
        $region39: #{tpu_custom_call.1} parent=11 // pred_region
          _
        $region40: #{tpu_custom_call.1} parent=11 // pred_fallthru
          _
        // Predicated region
        $region41: #{tpu_custom_call.1} parent=11 // pred_check
          %p271 = pneg %p209
        $region42: #{tpu_custom_call.1} parent=11 // pred_check_branch
          %273 = sbr.rel (%p271) target = $region44
        $region43: #{tpu_custom_call.1} parent=11 // pred_region
          _
        $region44: #{tpu_custom_call.1} parent=11 // pred_fallthru
          _
      $region12: #{tpu_custom_call.1} parent=5 // pred_fallthru
        _
      %p274 = scmp.lt.s32.totalorder %s15, 2
      // Predicated region
      $region45: #{tpu_custom_call.1} parent=5 // pred_check
        %p275 = pneg %p274
      $region46: #{tpu_custom_call.1} parent=5 // pred_check_branch
        %277 = sbr.rel (%p275) target = $region48
      $region47: #{tpu_custom_call.1} parent=5 // pred_region
        // Predicated region
        $region49: #{tpu_custom_call.1} parent=47 // pred_check
          %p278 = pneg %p35
        $region50: #{tpu_custom_call.1} parent=47 // pred_check_branch
          %280 = sbr.rel (%p278) target = $region52
        $region51: #{tpu_custom_call.1} parent=47 // pred_region
          %s281 = smul.u32 64, %s15
          %s282 = ssub.s32 125, %s281
          %p283 = scmp.lt.s32.totalorder %s282, 64
          %s284 = scalar_select %p283, %s282, 64
          %s285 = smul.u32 8, %s284
          %p286 = scmp.lt.s32.totalorder %s281, 124
          %s287 = scalar_select %p286, %s281, 124
          %s288 = smul.addr %s287, 8
          %s289 = scalar_lea.vmem %s0, %s288
          %s290 = smul.u32 64, %s15
          %s291 = ssub.s32 125, %s290
          %p292 = scmp.lt.s32.totalorder %s291, 64
          %s293 = scalar_select %p292, %s291, 64
          %s294 = smul.u32 8, %s293
        $region52: #{tpu_custom_call.1} parent=47 // pred_fallthru
          _
      $region48: #{tpu_custom_call.1} parent=5 // pred_fallthru
        _
      %p295 = scmp.le.s32.totalorder 1, %s15
      %p296 = scmp.lt.s32.totalorder %s15, 3
      %p297 = pnand %p295, %p296
      %p298 = pneg %p297
      // Predicated region
      $region53: #{tpu_custom_call.1} parent=5 // pred_check
        _
      $region54: #{tpu_custom_call.1} parent=5 // pred_check_branch
        %300 = sbr.rel (%p297) target = $region56
      $region55: #{tpu_custom_call.1} parent=5 // pred_region
        %s301 = ssub.s32 %s15, 1
        %s302 = smul.u32 64, %s20
        %s303 = ssub.s32 125, %s302
        %p304 = scmp.lt.s32.totalorder %s303, 64
        %s305 = scalar_select %p304, %s303, 64
        %s306 = smul.u32 8, %s305
        %p307 = scmp.lt.s32.totalorder %s302, 124
        %s308 = scalar_select %p307, %s302, 124
        %s309 = smul.addr %s308, 8
        %s310 = scalar_lea.vmem %s0, %s309
        %p311 = pneg %p41
        %p312 = pneg %p38
        %p313 = pneg %p62
        %p314 = pneg %p59
        %p315 = pneg %p83
        %p316 = pneg %p80
        %p317 = pneg %p104
        %p318 = pneg %p101
        %p319 = pneg %p125
        %p320 = pneg %p122
        %p321 = pneg %p146
        %p322 = pneg %p143
        %p323 = pneg %p167
        %p324 = pneg %p164
        %p325 = pneg %p188
        %p326 = pneg %p185
        %p327 = pneg %p209
        %p328 = pneg %p206
        %p329 = pneg %p235
        %p330 = pneg %p232
        %s331 = sand.u32 %s222, 1
        %s332 = sand.u32 %s222, 1
        %s333 = smul.addr %s332, 512
        %s334 = scalar_lea.vmem [#allocation2], %s333
        %s335 = smul.u32 64, %s20
        %s336 = ssub.s32 125, %s335
        %p337 = scmp.lt.s32.totalorder %s336, 64
        %s338 = scalar_select %p337, %s336, 64
        %s339 = smul.u32 8, %s338
        %p340 = scmp.lt.s32.totalorder %s335, 124
        %s341 = scalar_select %p340, %s335, 124
        %s342 = smul.addr %s341, 8
        %s343 = scalar_lea.vmem %s0, %s342
        %s344 = smul.u32 64, %s20
        %s345 = ssub.s32 125, %s344
        %p346 = scmp.lt.s32.totalorder %s345, 64
        %s347 = scalar_select %p346, %s345, 64
        %s348 = smul.u32 8, %s347
        %s349 = smul.u32 64, %s20
        %s350 = ssub.s32 125, %s349
        %p351 = scmp.lt.s32.totalorder %s350, 64
        %s352 = scalar_select %p351, %s350, 64
        %s353 = smul.u32 8, %s352
        %v354 = vld [vmem:[%s343] sm:$0xff]
        %v355 = vld [vmem:[%s343 + $0x8] sm:$0xff]
        %v356 = vld [vmem:[%s343 + $0x10] sm:$0xff]
        %v357 = vld [vmem:[%s343 + $0x18] sm:$0xff]
        %v358 = vld [vmem:[%s343 + $0x20] sm:$0xff]
        %v359 = vld [vmem:[%s343 + $0x28] sm:$0xff]
        %v360 = vld [vmem:[%s343 + $0x30] sm:$0xff]
        %v361 = vld [vmem:[%s343 + $0x38] sm:$0xff]
        %v362 = vld [vmem:[%s343 + $0x40] sm:$0xff]
        %v363 = vld [vmem:[%s343 + $0x48] sm:$0xff]
        %v364 = vld [vmem:[%s343 + $0x50] sm:$0xff]
        %v365 = vld [vmem:[%s343 + $0x58] sm:$0xff]
        %v366 = vld [vmem:[%s343 + $0x60] sm:$0xff]
        %v367 = vld [vmem:[%s343 + $0x68] sm:$0xff]
        %v368 = vld [vmem:[%s343 + $0x70] sm:$0xff]
        %v369 = vld [vmem:[%s343 + $0x78] sm:$0xff]
        %v370 = vld [vmem:[%s343 + $0x80] sm:$0xff]
        %v371 = vld [vmem:[%s343 + $0x88] sm:$0xff]
        %v372 = vld [vmem:[%s343 + $0x90] sm:$0xff]
        %v373 = vld [vmem:[%s343 + $0x98] sm:$0xff]
        %v374 = vld [vmem:[%s343 + $0xa0] sm:$0xff]
        %v375 = vld [vmem:[%s343 + $0xa8] sm:$0xff]
        %v376 = vld [vmem:[%s343 + $0xb0] sm:$0xff]
        %v377 = vld [vmem:[%s343 + $0xb8] sm:$0xff]
        %v378 = vld [vmem:[%s343 + $0xc0] sm:$0xff]
        %v379 = vld [vmem:[%s343 + $0xc8] sm:$0xff]
        %v380 = vld [vmem:[%s343 + $0xd0] sm:$0xff]
        %v381 = vld [vmem:[%s343 + $0xd8] sm:$0xff]
        %v382 = vld [vmem:[%s343 + $0xe0] sm:$0xff]
        %v383 = vld [vmem:[%s343 + $0xe8] sm:$0xff]
        %v384 = vld [vmem:[%s343 + $0xf0] sm:$0xff]
        %v385 = vld [vmem:[%s343 + $0xf8] sm:$0xff]
        %v386 = vld [vmem:[%s343 + $0x100] sm:$0xff]
        %v387 = vld [vmem:[%s343 + $0x108] sm:$0xff]
        %v388 = vld [vmem:[%s343 + $0x110] sm:$0xff]
        %v389 = vld [vmem:[%s343 + $0x118] sm:$0xff]
        %v390 = vld [vmem:[%s343 + $0x120] sm:$0xff]
        %v391 = vld [vmem:[%s343 + $0x128] sm:$0xff]
        %v392 = vld [vmem:[%s343 + $0x130] sm:$0xff]
        %v393 = vld [vmem:[%s343 + $0x138] sm:$0xff]
        %v394 = vld [vmem:[%s343 + $0x140] sm:$0xff]
        %v395 = vld [vmem:[%s343 + $0x148] sm:$0xff]
        %v396 = vld [vmem:[%s343 + $0x150] sm:$0xff]
        %v397 = vld [vmem:[%s343 + $0x158] sm:$0xff]
        %v398 = vld [vmem:[%s343 + $0x160] sm:$0xff]
        %v399 = vld [vmem:[%s343 + $0x168] sm:$0xff]
        %v400 = vld [vmem:[%s343 + $0x170] sm:$0xff]
        %v401 = vld [vmem:[%s343 + $0x178] sm:$0xff]
        %v402 = vld [vmem:[%s343 + $0x180] sm:$0xff]
        %v403 = vld [vmem:[%s343 + $0x188] sm:$0xff]
        %v404 = vld [vmem:[%s343 + $0x190] sm:$0xff]
        %v405 = vld [vmem:[%s343 + $0x198] sm:$0xff]
        %v406 = vld [vmem:[%s343 + $0x1a0] sm:$0xff]
        %v407 = vld [vmem:[%s343 + $0x1a8] sm:$0xff]
        %v408 = vld [vmem:[%s343 + $0x1b0] sm:$0xff]
        %v409 = vld [vmem:[%s343 + $0x1b8] sm:$0xff]
        %v410 = vld [vmem:[%s343 + $0x1c0] sm:$0xff]
        %v411 = vld [vmem:[%s343 + $0x1c8] sm:$0xff]
        %v412 = vld [vmem:[%s343 + $0x1d0] sm:$0xff]
        %v413 = vld [vmem:[%s343 + $0x1d8] sm:$0xff]
        %v414 = vld [vmem:[%s343 + $0x1e0] sm:$0xff]
        %v415 = vld [vmem:[%s343 + $0x1e8] sm:$0xff]
        %v416 = vld [vmem:[%s343 + $0x1f0] sm:$0xff]
        %v417 = vld [vmem:[%s343 + $0x1f8] sm:$0xff]
        %v418 = vld [vmem:[%s1] sm:$0x7]
        %420 = vset.pattern.permute.xlu0 0
        %421 = vperm.xlu0 %420, %v354
        %v422 = vpop.permute.xlu0 %421
        %425 = vset.pattern.permute.xlu0 0
        %426 = vperm.xlu0 %425, %v355
        %v427 = vpop.permute.xlu0 %426
        %430 = vset.pattern.permute.xlu0 0
        %431 = vperm.xlu0 %430, %v356
        %v432 = vpop.permute.xlu0 %431
        %435 = vset.pattern.permute.xlu0 0
        %436 = vperm.xlu0 %435, %v357
        %v437 = vpop.permute.xlu0 %436
        %440 = vset.pattern.permute.xlu0 0
        %441 = vperm.xlu0 %440, %v358
        %v442 = vpop.permute.xlu0 %441
        %445 = vset.pattern.permute.xlu0 0
        %446 = vperm.xlu0 %445, %v359
        %v447 = vpop.permute.xlu0 %446
        %450 = vset.pattern.permute.xlu0 0
        %451 = vperm.xlu0 %450, %v360
        %v452 = vpop.permute.xlu0 %451
        %455 = vset.pattern.permute.xlu0 0
        %456 = vperm.xlu0 %455, %v361
        %v457 = vpop.permute.xlu0 %456
        %460 = vset.pattern.permute.xlu0 0
        %461 = vperm.xlu0 %460, %v362
        %v462 = vpop.permute.xlu0 %461
        %465 = vset.pattern.permute.xlu0 0
        %466 = vperm.xlu0 %465, %v363
        %v467 = vpop.permute.xlu0 %466
        %470 = vset.pattern.permute.xlu0 0
        %471 = vperm.xlu0 %470, %v364
        %v472 = vpop.permute.xlu0 %471
        %475 = vset.pattern.permute.xlu0 0
        %476 = vperm.xlu0 %475, %v365
        %v477 = vpop.permute.xlu0 %476
        %480 = vset.pattern.permute.xlu0 0
        %481 = vperm.xlu0 %480, %v366
        %v482 = vpop.permute.xlu0 %481
        %485 = vset.pattern.permute.xlu0 0
        %486 = vperm.xlu0 %485, %v367
        %v487 = vpop.permute.xlu0 %486
        %490 = vset.pattern.permute.xlu0 0
        %491 = vperm.xlu0 %490, %v368
        %v492 = vpop.permute.xlu0 %491
        %495 = vset.pattern.permute.xlu0 0
        %496 = vperm.xlu0 %495, %v369
        %v497 = vpop.permute.xlu0 %496
        %500 = vset.pattern.permute.xlu0 0
        %501 = vperm.xlu0 %500, %v370
        %v502 = vpop.permute.xlu0 %501
        %505 = vset.pattern.permute.xlu0 0
        %506 = vperm.xlu0 %505, %v371
        %v507 = vpop.permute.xlu0 %506
        %510 = vset.pattern.permute.xlu0 0
        %511 = vperm.xlu0 %510, %v372
        %v512 = vpop.permute.xlu0 %511
        %515 = vset.pattern.permute.xlu0 0
        %516 = vperm.xlu0 %515, %v373
        %v517 = vpop.permute.xlu0 %516
        %520 = vset.pattern.permute.xlu0 0
        %521 = vperm.xlu0 %520, %v374
        %v522 = vpop.permute.xlu0 %521
        %525 = vset.pattern.permute.xlu0 0
        %526 = vperm.xlu0 %525, %v375
        %v527 = vpop.permute.xlu0 %526
        %530 = vset.pattern.permute.xlu0 0
        %531 = vperm.xlu0 %530, %v376
        %v532 = vpop.permute.xlu0 %531
        %535 = vset.pattern.permute.xlu0 0
        %536 = vperm.xlu0 %535, %v377
        %v537 = vpop.permute.xlu0 %536
        %540 = vset.pattern.permute.xlu0 0
        %541 = vperm.xlu0 %540, %v378
        %v542 = vpop.permute.xlu0 %541
        %545 = vset.pattern.permute.xlu0 0
        %546 = vperm.xlu0 %545, %v379
        %v547 = vpop.permute.xlu0 %546
        %550 = vset.pattern.permute.xlu0 0
        %551 = vperm.xlu0 %550, %v380
        %v552 = vpop.permute.xlu0 %551
        %555 = vset.pattern.permute.xlu0 0
        %556 = vperm.xlu0 %555, %v381
        %v557 = vpop.permute.xlu0 %556
        %560 = vset.pattern.permute.xlu0 0
        %561 = vperm.xlu0 %560, %v382
        %v562 = vpop.permute.xlu0 %561
        %565 = vset.pattern.permute.xlu0 0
        %566 = vperm.xlu0 %565, %v383
        %v567 = vpop.permute.xlu0 %566
        %570 = vset.pattern.permute.xlu0 0
        %571 = vperm.xlu0 %570, %v384
        %v572 = vpop.permute.xlu0 %571
        %575 = vset.pattern.permute.xlu0 0
        %576 = vperm.xlu0 %575, %v385
        %v577 = vpop.permute.xlu0 %576
        %580 = vset.pattern.permute.xlu0 0
        %581 = vperm.xlu0 %580, %v386
        %v582 = vpop.permute.xlu0 %581
        %585 = vset.pattern.permute.xlu0 0
        %586 = vperm.xlu0 %585, %v387
        %v587 = vpop.permute.xlu0 %586
        %590 = vset.pattern.permute.xlu0 0
        %591 = vperm.xlu0 %590, %v388
        %v592 = vpop.permute.xlu0 %591
        %595 = vset.pattern.permute.xlu0 0
        %596 = vperm.xlu0 %595, %v389
        %v597 = vpop.permute.xlu0 %596
        %600 = vset.pattern.permute.xlu0 0
        %601 = vperm.xlu0 %600, %v390
        %v602 = vpop.permute.xlu0 %601
        %605 = vset.pattern.permute.xlu0 0
        %606 = vperm.xlu0 %605, %v391
        %v607 = vpop.permute.xlu0 %606
        %610 = vset.pattern.permute.xlu0 0
        %611 = vperm.xlu0 %610, %v392
        %v612 = vpop.permute.xlu0 %611
        %615 = vset.pattern.permute.xlu0 0
        %616 = vperm.xlu0 %615, %v393
        %v617 = vpop.permute.xlu0 %616
        %620 = vset.pattern.permute.xlu0 0
        %621 = vperm.xlu0 %620, %v394
        %v622 = vpop.permute.xlu0 %621
        %625 = vset.pattern.permute.xlu0 0
        %626 = vperm.xlu0 %625, %v395
        %v627 = vpop.permute.xlu0 %626
        %630 = vset.pattern.permute.xlu0 0
        %631 = vperm.xlu0 %630, %v396
        %v632 = vpop.permute.xlu0 %631
        %635 = vset.pattern.permute.xlu0 0
        %636 = vperm.xlu0 %635, %v397
        %v637 = vpop.permute.xlu0 %636
        %640 = vset.pattern.permute.xlu0 0
        %641 = vperm.xlu0 %640, %v398
        %v642 = vpop.permute.xlu0 %641
        %645 = vset.pattern.permute.xlu0 0
        %646 = vperm.xlu0 %645, %v399
        %v647 = vpop.permute.xlu0 %646
        %650 = vset.pattern.permute.xlu0 0
        %651 = vperm.xlu0 %650, %v400
        %v652 = vpop.permute.xlu0 %651
        %655 = vset.pattern.permute.xlu0 0
        %656 = vperm.xlu0 %655, %v401
        %v657 = vpop.permute.xlu0 %656
        %660 = vset.pattern.permute.xlu0 0
        %661 = vperm.xlu0 %660, %v402
        %v662 = vpop.permute.xlu0 %661
        %665 = vset.pattern.permute.xlu0 0
        %666 = vperm.xlu0 %665, %v403
        %v667 = vpop.permute.xlu0 %666
        %670 = vset.pattern.permute.xlu0 0
        %671 = vperm.xlu0 %670, %v404
        %v672 = vpop.permute.xlu0 %671
        %675 = vset.pattern.permute.xlu0 0
        %676 = vperm.xlu0 %675, %v405
        %v677 = vpop.permute.xlu0 %676
        %680 = vset.pattern.permute.xlu0 0
        %681 = vperm.xlu0 %680, %v406
        %v682 = vpop.permute.xlu0 %681
        %685 = vset.pattern.permute.xlu0 0
        %686 = vperm.xlu0 %685, %v407
        %v687 = vpop.permute.xlu0 %686
        %690 = vset.pattern.permute.xlu0 0
        %691 = vperm.xlu0 %690, %v408
        %v692 = vpop.permute.xlu0 %691
        %695 = vset.pattern.permute.xlu0 0
        %696 = vperm.xlu0 %695, %v409
        %v697 = vpop.permute.xlu0 %696
        %700 = vset.pattern.permute.xlu0 0
        %701 = vperm.xlu0 %700, %v410
        %v702 = vpop.permute.xlu0 %701
        %705 = vset.pattern.permute.xlu0 0
        %706 = vperm.xlu0 %705, %v411
        %v707 = vpop.permute.xlu0 %706
        %710 = vset.pattern.permute.xlu0 0
        %711 = vperm.xlu0 %710, %v412
        %v712 = vpop.permute.xlu0 %711
        %715 = vset.pattern.permute.xlu0 0
        %716 = vperm.xlu0 %715, %v413
        %v717 = vpop.permute.xlu0 %716
        %720 = vset.pattern.permute.xlu0 0
        %721 = vperm.xlu0 %720, %v414
        %v722 = vpop.permute.xlu0 %721
        %725 = vset.pattern.permute.xlu0 0
        %726 = vperm.xlu0 %725, %v415
        %v727 = vpop.permute.xlu0 %726
        %730 = vset.pattern.permute.xlu0 0
        %731 = vperm.xlu0 %730, %v416
        %v732 = vpop.permute.xlu0 %731
        %735 = vset.pattern.permute.xlu0 0
        %736 = vperm.xlu0 %735, %v417
        %v737 = vpop.permute.xlu0 %736
        %v739 = vperm.slane %v418, 0
        %v740 = vmul.f32 %v422, %v739
        %v741 = vmul.f32 %v427, %v739
        %v742 = vmul.f32 %v432, %v739
        %v743 = vmul.f32 %v437, %v739
        %v744 = vmul.f32 %v442, %v739
        %v745 = vmul.f32 %v447, %v739
        %v746 = vmul.f32 %v452, %v739
        %v747 = vmul.f32 %v457, %v739
        %v748 = vmul.f32 %v462, %v739
        %v749 = vmul.f32 %v467, %v739
        %v750 = vmul.f32 %v472, %v739
        %v751 = vmul.f32 %v477, %v739
        %v752 = vmul.f32 %v482, %v739
        %v753 = vmul.f32 %v487, %v739
        %v754 = vmul.f32 %v492, %v739
        %v755 = vmul.f32 %v497, %v739
        %v756 = vmul.f32 %v502, %v739
        %v757 = vmul.f32 %v507, %v739
        %v758 = vmul.f32 %v512, %v739
        %v759 = vmul.f32 %v517, %v739
        %v760 = vmul.f32 %v522, %v739
        %v761 = vmul.f32 %v527, %v739
        %v762 = vmul.f32 %v532, %v739
        %v763 = vmul.f32 %v537, %v739
        %v764 = vmul.f32 %v542, %v739
        %v765 = vmul.f32 %v547, %v739
        %v766 = vmul.f32 %v552, %v739
        %v767 = vmul.f32 %v557, %v739
        %v768 = vmul.f32 %v562, %v739
        %v769 = vmul.f32 %v567, %v739
        %v770 = vmul.f32 %v572, %v739
        %v771 = vmul.f32 %v577, %v739
        %v772 = vmul.f32 %v582, %v739
        %v773 = vmul.f32 %v587, %v739
        %v774 = vmul.f32 %v592, %v739
        %v775 = vmul.f32 %v597, %v739
        %v776 = vmul.f32 %v602, %v739
        %v777 = vmul.f32 %v607, %v739
        %v778 = vmul.f32 %v612, %v739
        %v779 = vmul.f32 %v617, %v739
        %v780 = vmul.f32 %v622, %v739
        %v781 = vmul.f32 %v627, %v739
        %v782 = vmul.f32 %v632, %v739
        %v783 = vmul.f32 %v637, %v739
        %v784 = vmul.f32 %v642, %v739
        %v785 = vmul.f32 %v647, %v739
        %v786 = vmul.f32 %v652, %v739
        %v787 = vmul.f32 %v657, %v739
        %v788 = vmul.f32 %v662, %v739
        %v789 = vmul.f32 %v667, %v739
        %v790 = vmul.f32 %v672, %v739
        %v791 = vmul.f32 %v677, %v739
        %v792 = vmul.f32 %v682, %v739
        %v793 = vmul.f32 %v687, %v739
        %v794 = vmul.f32 %v692, %v739
        %v795 = vmul.f32 %v697, %v739
        %v796 = vmul.f32 %v702, %v739
        %v797 = vmul.f32 %v707, %v739
        %v798 = vmul.f32 %v712, %v739
        %v799 = vmul.f32 %v717, %v739
        %v800 = vmul.f32 %v722, %v739
        %v801 = vmul.f32 %v727, %v739
        %v802 = vmul.f32 %v732, %v739
        %v803 = vmul.f32 %v737, %v739
        %804 = vset.pattern.permute.xlu0 1
        %805 = vperm.xlu0 %804, %v354
        %v806 = vpop.permute.xlu0 %805
        %808 = vset.pattern.permute.xlu0 1
        %809 = vperm.xlu0 %808, %v355
        %v810 = vpop.permute.xlu0 %809
        %812 = vset.pattern.permute.xlu0 1
        %813 = vperm.xlu0 %812, %v356
        %v814 = vpop.permute.xlu0 %813
        %816 = vset.pattern.permute.xlu0 1
        %817 = vperm.xlu0 %816, %v357
        %v818 = vpop.permute.xlu0 %817
        %820 = vset.pattern.permute.xlu0 1
        %821 = vperm.xlu0 %820, %v358
        %v822 = vpop.permute.xlu0 %821
        %824 = vset.pattern.permute.xlu0 1
        %825 = vperm.xlu0 %824, %v359
        %v826 = vpop.permute.xlu0 %825
        %828 = vset.pattern.permute.xlu0 1
        %829 = vperm.xlu0 %828, %v360
        %v830 = vpop.permute.xlu0 %829
        %832 = vset.pattern.permute.xlu0 1
        %833 = vperm.xlu0 %832, %v361
        %v834 = vpop.permute.xlu0 %833
        %836 = vset.pattern.permute.xlu0 1
        %837 = vperm.xlu0 %836, %v362
        %v838 = vpop.permute.xlu0 %837
        %840 = vset.pattern.permute.xlu0 1
        %841 = vperm.xlu0 %840, %v363
        %v842 = vpop.permute.xlu0 %841
        %844 = vset.pattern.permute.xlu0 1
        %845 = vperm.xlu0 %844, %v364
        %v846 = vpop.permute.xlu0 %845
        %848 = vset.pattern.permute.xlu0 1
        %849 = vperm.xlu0 %848, %v365
        %v850 = vpop.permute.xlu0 %849
        %852 = vset.pattern.permute.xlu0 1
        %853 = vperm.xlu0 %852, %v366
        %v854 = vpop.permute.xlu0 %853
        %856 = vset.pattern.permute.xlu0 1
        %857 = vperm.xlu0 %856, %v367
        %v858 = vpop.permute.xlu0 %857
        %860 = vset.pattern.permute.xlu0 1
        %861 = vperm.xlu0 %860, %v368
        %v862 = vpop.permute.xlu0 %861
        %864 = vset.pattern.permute.xlu0 1
        %865 = vperm.xlu0 %864, %v369
        %v866 = vpop.permute.xlu0 %865
        %868 = vset.pattern.permute.xlu0 1
        %869 = vperm.xlu0 %868, %v370
        %v870 = vpop.permute.xlu0 %869
        %872 = vset.pattern.permute.xlu0 1
        %873 = vperm.xlu0 %872, %v371
        %v874 = vpop.permute.xlu0 %873
        %876 = vset.pattern.permute.xlu0 1
        %877 = vperm.xlu0 %876, %v372
        %v878 = vpop.permute.xlu0 %877
        %880 = vset.pattern.permute.xlu0 1
        %881 = vperm.xlu0 %880, %v373
        %v882 = vpop.permute.xlu0 %881
        %884 = vset.pattern.permute.xlu0 1
        %885 = vperm.xlu0 %884, %v374
        %v886 = vpop.permute.xlu0 %885
        %888 = vset.pattern.permute.xlu0 1
        %889 = vperm.xlu0 %888, %v375
        %v890 = vpop.permute.xlu0 %889
        %892 = vset.pattern.permute.xlu0 1
        %893 = vperm.xlu0 %892, %v376
        %v894 = vpop.permute.xlu0 %893
        %896 = vset.pattern.permute.xlu0 1
        %897 = vperm.xlu0 %896, %v377
        %v898 = vpop.permute.xlu0 %897
        %900 = vset.pattern.permute.xlu0 1
        %901 = vperm.xlu0 %900, %v378
        %v902 = vpop.permute.xlu0 %901
        %904 = vset.pattern.permute.xlu0 1
        %905 = vperm.xlu0 %904, %v379
        %v906 = vpop.permute.xlu0 %905
        %908 = vset.pattern.permute.xlu0 1
        %909 = vperm.xlu0 %908, %v380
        %v910 = vpop.permute.xlu0 %909
        %912 = vset.pattern.permute.xlu0 1
        %913 = vperm.xlu0 %912, %v381
        %v914 = vpop.permute.xlu0 %913
        %916 = vset.pattern.permute.xlu0 1
        %917 = vperm.xlu0 %916, %v382
        %v918 = vpop.permute.xlu0 %917
        %920 = vset.pattern.permute.xlu0 1
        %921 = vperm.xlu0 %920, %v383
        %v922 = vpop.permute.xlu0 %921
        %924 = vset.pattern.permute.xlu0 1
        %925 = vperm.xlu0 %924, %v384
        %v926 = vpop.permute.xlu0 %925
        %928 = vset.pattern.permute.xlu0 1
        %929 = vperm.xlu0 %928, %v385
        %v930 = vpop.permute.xlu0 %929
        %932 = vset.pattern.permute.xlu0 1
        %933 = vperm.xlu0 %932, %v386
        %v934 = vpop.permute.xlu0 %933
        %936 = vset.pattern.permute.xlu0 1
        %937 = vperm.xlu0 %936, %v387
        %v938 = vpop.permute.xlu0 %937
        %940 = vset.pattern.permute.xlu0 1
        %941 = vperm.xlu0 %940, %v388
        %v942 = vpop.permute.xlu0 %941
        %944 = vset.pattern.permute.xlu0 1
        %945 = vperm.xlu0 %944, %v389
        %v946 = vpop.permute.xlu0 %945
        %948 = vset.pattern.permute.xlu0 1
        %949 = vperm.xlu0 %948, %v390
        %v950 = vpop.permute.xlu0 %949
        %952 = vset.pattern.permute.xlu0 1
        %953 = vperm.xlu0 %952, %v391
        %v954 = vpop.permute.xlu0 %953
        %956 = vset.pattern.permute.xlu0 1
        %957 = vperm.xlu0 %956, %v392
        %v958 = vpop.permute.xlu0 %957
        %960 = vset.pattern.permute.xlu0 1
        %961 = vperm.xlu0 %960, %v393
        %v962 = vpop.permute.xlu0 %961
        %964 = vset.pattern.permute.xlu0 1
        %965 = vperm.xlu0 %964, %v394
        %v966 = vpop.permute.xlu0 %965
        %968 = vset.pattern.permute.xlu0 1
        %969 = vperm.xlu0 %968, %v395
        %v970 = vpop.permute.xlu0 %969
        %972 = vset.pattern.permute.xlu0 1
        %973 = vperm.xlu0 %972, %v396
        %v974 = vpop.permute.xlu0 %973
        %976 = vset.pattern.permute.xlu0 1
        %977 = vperm.xlu0 %976, %v397
        %v978 = vpop.permute.xlu0 %977
        %980 = vset.pattern.permute.xlu0 1
        %981 = vperm.xlu0 %980, %v398
        %v982 = vpop.permute.xlu0 %981
        %984 = vset.pattern.permute.xlu0 1
        %985 = vperm.xlu0 %984, %v399
        %v986 = vpop.permute.xlu0 %985
        %988 = vset.pattern.permute.xlu0 1
        %989 = vperm.xlu0 %988, %v400
        %v990 = vpop.permute.xlu0 %989
        %992 = vset.pattern.permute.xlu0 1
        %993 = vperm.xlu0 %992, %v401
        %v994 = vpop.permute.xlu0 %993
        %996 = vset.pattern.permute.xlu0 1
        %997 = vperm.xlu0 %996, %v402
        %v998 = vpop.permute.xlu0 %997
        %1000 = vset.pattern.permute.xlu0 1
        %1001 = vperm.xlu0 %1000, %v403
        %v1002 = vpop.permute.xlu0 %1001
        %1004 = vset.pattern.permute.xlu0 1
        %1005 = vperm.xlu0 %1004, %v404
        %v1006 = vpop.permute.xlu0 %1005
        %1008 = vset.pattern.permute.xlu0 1
        %1009 = vperm.xlu0 %1008, %v405
        %v1010 = vpop.permute.xlu0 %1009
        %1012 = vset.pattern.permute.xlu0 1
        %1013 = vperm.xlu0 %1012, %v406
        %v1014 = vpop.permute.xlu0 %1013
        %1016 = vset.pattern.permute.xlu0 1
        %1017 = vperm.xlu0 %1016, %v407
        %v1018 = vpop.permute.xlu0 %1017
        %1020 = vset.pattern.permute.xlu0 1
        %1021 = vperm.xlu0 %1020, %v408
        %v1022 = vpop.permute.xlu0 %1021
        %1024 = vset.pattern.permute.xlu0 1
        %1025 = vperm.xlu0 %1024, %v409
        %v1026 = vpop.permute.xlu0 %1025
        %1028 = vset.pattern.permute.xlu0 1
        %1029 = vperm.xlu0 %1028, %v410
        %v1030 = vpop.permute.xlu0 %1029
        %1032 = vset.pattern.permute.xlu0 1
        %1033 = vperm.xlu0 %1032, %v411
        %v1034 = vpop.permute.xlu0 %1033
        %1036 = vset.pattern.permute.xlu0 1
        %1037 = vperm.xlu0 %1036, %v412
        %v1038 = vpop.permute.xlu0 %1037
        %1040 = vset.pattern.permute.xlu0 1
        %1041 = vperm.xlu0 %1040, %v413
        %v1042 = vpop.permute.xlu0 %1041
        %1044 = vset.pattern.permute.xlu0 1
        %1045 = vperm.xlu0 %1044, %v414
        %v1046 = vpop.permute.xlu0 %1045
        %1048 = vset.pattern.permute.xlu0 1
        %1049 = vperm.xlu0 %1048, %v415
        %v1050 = vpop.permute.xlu0 %1049
        %1052 = vset.pattern.permute.xlu0 1
        %1053 = vperm.xlu0 %1052, %v416
        %v1054 = vpop.permute.xlu0 %1053
        %1056 = vset.pattern.permute.xlu0 1
        %1057 = vperm.xlu0 %1056, %v417
        %v1058 = vpop.permute.xlu0 %1057
        %v1060 = vperm.slane %v418, 1
        %v1061 = vmul.f32 %v806, %v1060
        %v1062 = vmul.f32 %v810, %v1060
        %v1063 = vmul.f32 %v814, %v1060
        %v1064 = vmul.f32 %v818, %v1060
        %v1065 = vmul.f32 %v822, %v1060
        %v1066 = vmul.f32 %v826, %v1060
        %v1067 = vmul.f32 %v830, %v1060
        %v1068 = vmul.f32 %v834, %v1060
        %v1069 = vmul.f32 %v838, %v1060
        %v1070 = vmul.f32 %v842, %v1060
        %v1071 = vmul.f32 %v846, %v1060
        %v1072 = vmul.f32 %v850, %v1060
        %v1073 = vmul.f32 %v854, %v1060
        %v1074 = vmul.f32 %v858, %v1060
        %v1075 = vmul.f32 %v862, %v1060
        %v1076 = vmul.f32 %v866, %v1060
        %v1077 = vmul.f32 %v870, %v1060
        %v1078 = vmul.f32 %v874, %v1060
        %v1079 = vmul.f32 %v878, %v1060
        %v1080 = vmul.f32 %v882, %v1060
        %v1081 = vmul.f32 %v886, %v1060
        %v1082 = vmul.f32 %v890, %v1060
        %v1083 = vmul.f32 %v894, %v1060
        %v1084 = vmul.f32 %v898, %v1060
        %v1085 = vmul.f32 %v902, %v1060
        %v1086 = vmul.f32 %v906, %v1060
        %v1087 = vmul.f32 %v910, %v1060
        %v1088 = vmul.f32 %v914, %v1060
        %v1089 = vmul.f32 %v918, %v1060
        %v1090 = vmul.f32 %v922, %v1060
        %v1091 = vmul.f32 %v926, %v1060
        %v1092 = vmul.f32 %v930, %v1060
        %v1093 = vmul.f32 %v934, %v1060
        %v1094 = vmul.f32 %v938, %v1060
        %v1095 = vmul.f32 %v942, %v1060
        %v1096 = vmul.f32 %v946, %v1060
        %v1097 = vmul.f32 %v950, %v1060
        %v1098 = vmul.f32 %v954, %v1060
        %v1099 = vmul.f32 %v958, %v1060
        %v1100 = vmul.f32 %v962, %v1060
        %v1101 = vmul.f32 %v966, %v1060
        %v1102 = vmul.f32 %v970, %v1060
        %v1103 = vmul.f32 %v974, %v1060
        %v1104 = vmul.f32 %v978, %v1060
        %v1105 = vmul.f32 %v982, %v1060
        %v1106 = vmul.f32 %v986, %v1060
        %v1107 = vmul.f32 %v990, %v1060
        %v1108 = vmul.f32 %v994, %v1060
        %v1109 = vmul.f32 %v998, %v1060
        %v1110 = vmul.f32 %v1002, %v1060
        %v1111 = vmul.f32 %v1006, %v1060
        %v1112 = vmul.f32 %v1010, %v1060
        %v1113 = vmul.f32 %v1014, %v1060
        %v1114 = vmul.f32 %v1018, %v1060
        %v1115 = vmul.f32 %v1022, %v1060
        %v1116 = vmul.f32 %v1026, %v1060
        %v1117 = vmul.f32 %v1030, %v1060
        %v1118 = vmul.f32 %v1034, %v1060
        %v1119 = vmul.f32 %v1038, %v1060
        %v1120 = vmul.f32 %v1042, %v1060
        %v1121 = vmul.f32 %v1046, %v1060
        %v1122 = vmul.f32 %v1050, %v1060
        %v1123 = vmul.f32 %v1054, %v1060
        %v1124 = vmul.f32 %v1058, %v1060
        %v1125 = vadd.f32 %v740, %v1061
        %v1126 = vadd.f32 %v741, %v1062
        %v1127 = vadd.f32 %v742, %v1063
        %v1128 = vadd.f32 %v743, %v1064
        %v1129 = vadd.f32 %v744, %v1065
        %v1130 = vadd.f32 %v745, %v1066
        %v1131 = vadd.f32 %v746, %v1067
        %v1132 = vadd.f32 %v747, %v1068
        %v1133 = vadd.f32 %v748, %v1069
        %v1134 = vadd.f32 %v749, %v1070
        %v1135 = vadd.f32 %v750, %v1071
        %v1136 = vadd.f32 %v751, %v1072
        %v1137 = vadd.f32 %v752, %v1073
        %v1138 = vadd.f32 %v753, %v1074
        %v1139 = vadd.f32 %v754, %v1075
        %v1140 = vadd.f32 %v755, %v1076
        %v1141 = vadd.f32 %v756, %v1077
        %v1142 = vadd.f32 %v757, %v1078
        %v1143 = vadd.f32 %v758, %v1079
        %v1144 = vadd.f32 %v759, %v1080
        %v1145 = vadd.f32 %v760, %v1081
        %v1146 = vadd.f32 %v761, %v1082
        %v1147 = vadd.f32 %v762, %v1083
        %v1148 = vadd.f32 %v763, %v1084
        %v1149 = vadd.f32 %v764, %v1085
        %v1150 = vadd.f32 %v765, %v1086
        %v1151 = vadd.f32 %v766, %v1087
        %v1152 = vadd.f32 %v767, %v1088
        %v1153 = vadd.f32 %v768, %v1089
        %v1154 = vadd.f32 %v769, %v1090
        %v1155 = vadd.f32 %v770, %v1091
        %v1156 = vadd.f32 %v771, %v1092
        %v1157 = vadd.f32 %v772, %v1093
        %v1158 = vadd.f32 %v773, %v1094
        %v1159 = vadd.f32 %v774, %v1095
        %v1160 = vadd.f32 %v775, %v1096
        %v1161 = vadd.f32 %v776, %v1097
        %v1162 = vadd.f32 %v777, %v1098
        %v1163 = vadd.f32 %v778, %v1099
        %v1164 = vadd.f32 %v779, %v1100
        %v1165 = vadd.f32 %v780, %v1101
        %v1166 = vadd.f32 %v781, %v1102
        %v1167 = vadd.f32 %v782, %v1103
        %v1168 = vadd.f32 %v783, %v1104
        %v1169 = vadd.f32 %v784, %v1105
        %v1170 = vadd.f32 %v785, %v1106
        %v1171 = vadd.f32 %v786, %v1107
        %v1172 = vadd.f32 %v787, %v1108
        %v1173 = vadd.f32 %v788, %v1109
        %v1174 = vadd.f32 %v789, %v1110
        %v1175 = vadd.f32 %v790, %v1111
        %v1176 = vadd.f32 %v791, %v1112
        %v1177 = vadd.f32 %v792, %v1113
        %v1178 = vadd.f32 %v793, %v1114
        %v1179 = vadd.f32 %v794, %v1115
        %v1180 = vadd.f32 %v795, %v1116
        %v1181 = vadd.f32 %v796, %v1117
        %v1182 = vadd.f32 %v797, %v1118
        %v1183 = vadd.f32 %v798, %v1119
        %v1184 = vadd.f32 %v799, %v1120
        %v1185 = vadd.f32 %v800, %v1121
        %v1186 = vadd.f32 %v801, %v1122
        %v1187 = vadd.f32 %v802, %v1123
        %v1188 = vadd.f32 %v803, %v1124
        %1189 = vset.pattern.permute.xlu0 2
        %1190 = vperm.xlu0 %1189, %v354
        %v1191 = vpop.permute.xlu0 %1190
        %1193 = vset.pattern.permute.xlu0 2
        %1194 = vperm.xlu0 %1193, %v355
        %v1195 = vpop.permute.xlu0 %1194
        %1197 = vset.pattern.permute.xlu0 2
        %1198 = vperm.xlu0 %1197, %v356
        %v1199 = vpop.permute.xlu0 %1198
        %1201 = vset.pattern.permute.xlu0 2
        %1202 = vperm.xlu0 %1201, %v357
        %v1203 = vpop.permute.xlu0 %1202
        %1205 = vset.pattern.permute.xlu0 2
        %1206 = vperm.xlu0 %1205, %v358
        %v1207 = vpop.permute.xlu0 %1206
        %1209 = vset.pattern.permute.xlu0 2
        %1210 = vperm.xlu0 %1209, %v359
        %v1211 = vpop.permute.xlu0 %1210
        %1213 = vset.pattern.permute.xlu0 2
        %1214 = vperm.xlu0 %1213, %v360
        %v1215 = vpop.permute.xlu0 %1214
        %1217 = vset.pattern.permute.xlu0 2
        %1218 = vperm.xlu0 %1217, %v361
        %v1219 = vpop.permute.xlu0 %1218
        %1221 = vset.pattern.permute.xlu0 2
        %1222 = vperm.xlu0 %1221, %v362
        %v1223 = vpop.permute.xlu0 %1222
        %1225 = vset.pattern.permute.xlu0 2
        %1226 = vperm.xlu0 %1225, %v363
        %v1227 = vpop.permute.xlu0 %1226
        %1229 = vset.pattern.permute.xlu0 2
        %1230 = vperm.xlu0 %1229, %v364
        %v1231 = vpop.permute.xlu0 %1230
        %1233 = vset.pattern.permute.xlu0 2
        %1234 = vperm.xlu0 %1233, %v365
        %v1235 = vpop.permute.xlu0 %1234
        %1237 = vset.pattern.permute.xlu0 2
        %1238 = vperm.xlu0 %1237, %v366
        %v1239 = vpop.permute.xlu0 %1238
        %1241 = vset.pattern.permute.xlu0 2
        %1242 = vperm.xlu0 %1241, %v367
        %v1243 = vpop.permute.xlu0 %1242
        %1245 = vset.pattern.permute.xlu0 2
        %1246 = vperm.xlu0 %1245, %v368
        %v1247 = vpop.permute.xlu0 %1246
        %1249 = vset.pattern.permute.xlu0 2
        %1250 = vperm.xlu0 %1249, %v369
        %v1251 = vpop.permute.xlu0 %1250
        %1253 = vset.pattern.permute.xlu0 2
        %1254 = vperm.xlu0 %1253, %v370
        %v1255 = vpop.permute.xlu0 %1254
        %1257 = vset.pattern.permute.xlu0 2
        %1258 = vperm.xlu0 %1257, %v371
        %v1259 = vpop.permute.xlu0 %1258
        %1261 = vset.pattern.permute.xlu0 2
        %1262 = vperm.xlu0 %1261, %v372
        %v1263 = vpop.permute.xlu0 %1262
        %1265 = vset.pattern.permute.xlu0 2
        %1266 = vperm.xlu0 %1265, %v373
        %v1267 = vpop.permute.xlu0 %1266
        %1269 = vset.pattern.permute.xlu0 2
        %1270 = vperm.xlu0 %1269, %v374
        %v1271 = vpop.permute.xlu0 %1270
        %1273 = vset.pattern.permute.xlu0 2
        %1274 = vperm.xlu0 %1273, %v375
        %v1275 = vpop.permute.xlu0 %1274
        %1277 = vset.pattern.permute.xlu0 2
        %1278 = vperm.xlu0 %1277, %v376
        %v1279 = vpop.permute.xlu0 %1278
        %1281 = vset.pattern.permute.xlu0 2
        %1282 = vperm.xlu0 %1281, %v377
        %v1283 = vpop.permute.xlu0 %1282
        %1285 = vset.pattern.permute.xlu0 2
        %1286 = vperm.xlu0 %1285, %v378
        %v1287 = vpop.permute.xlu0 %1286
        %1289 = vset.pattern.permute.xlu0 2
        %1290 = vperm.xlu0 %1289, %v379
        %v1291 = vpop.permute.xlu0 %1290
        %1293 = vset.pattern.permute.xlu0 2
        %1294 = vperm.xlu0 %1293, %v380
        %v1295 = vpop.permute.xlu0 %1294
        %1297 = vset.pattern.permute.xlu0 2
        %1298 = vperm.xlu0 %1297, %v381
        %v1299 = vpop.permute.xlu0 %1298
        %1301 = vset.pattern.permute.xlu0 2
        %1302 = vperm.xlu0 %1301, %v382
        %v1303 = vpop.permute.xlu0 %1302
        %1305 = vset.pattern.permute.xlu0 2
        %1306 = vperm.xlu0 %1305, %v383
        %v1307 = vpop.permute.xlu0 %1306
        %1309 = vset.pattern.permute.xlu0 2
        %1310 = vperm.xlu0 %1309, %v384
        %v1311 = vpop.permute.xlu0 %1310
        %1313 = vset.pattern.permute.xlu0 2
        %1314 = vperm.xlu0 %1313, %v385
        %v1315 = vpop.permute.xlu0 %1314
        %1317 = vset.pattern.permute.xlu0 2
        %1318 = vperm.xlu0 %1317, %v386
        %v1319 = vpop.permute.xlu0 %1318
        %1321 = vset.pattern.permute.xlu0 2
        %1322 = vperm.xlu0 %1321, %v387
        %v1323 = vpop.permute.xlu0 %1322
        %1325 = vset.pattern.permute.xlu0 2
        %1326 = vperm.xlu0 %1325, %v388
        %v1327 = vpop.permute.xlu0 %1326
        %1329 = vset.pattern.permute.xlu0 2
        %1330 = vperm.xlu0 %1329, %v389
        %v1331 = vpop.permute.xlu0 %1330
        %1333 = vset.pattern.permute.xlu0 2
        %1334 = vperm.xlu0 %1333, %v390
        %v1335 = vpop.permute.xlu0 %1334
        %1337 = vset.pattern.permute.xlu0 2
        %1338 = vperm.xlu0 %1337, %v391
        %v1339 = vpop.permute.xlu0 %1338
        %1341 = vset.pattern.permute.xlu0 2
        %1342 = vperm.xlu0 %1341, %v392
        %v1343 = vpop.permute.xlu0 %1342
        %1345 = vset.pattern.permute.xlu0 2
        %1346 = vperm.xlu0 %1345, %v393
        %v1347 = vpop.permute.xlu0 %1346
        %1349 = vset.pattern.permute.xlu0 2
        %1350 = vperm.xlu0 %1349, %v394
        %v1351 = vpop.permute.xlu0 %1350
        %1353 = vset.pattern.permute.xlu0 2
        %1354 = vperm.xlu0 %1353, %v395
        %v1355 = vpop.permute.xlu0 %1354
        %1357 = vset.pattern.permute.xlu0 2
        %1358 = vperm.xlu0 %1357, %v396
        %v1359 = vpop.permute.xlu0 %1358
        %1361 = vset.pattern.permute.xlu0 2
        %1362 = vperm.xlu0 %1361, %v397
        %v1363 = vpop.permute.xlu0 %1362
        %1365 = vset.pattern.permute.xlu0 2
        %1366 = vperm.xlu0 %1365, %v398
        %v1367 = vpop.permute.xlu0 %1366
        %1369 = vset.pattern.permute.xlu0 2
        %1370 = vperm.xlu0 %1369, %v399
        %v1371 = vpop.permute.xlu0 %1370
        %1373 = vset.pattern.permute.xlu0 2
        %1374 = vperm.xlu0 %1373, %v400
        %v1375 = vpop.permute.xlu0 %1374
        %1377 = vset.pattern.permute.xlu0 2
        %1378 = vperm.xlu0 %1377, %v401
        %v1379 = vpop.permute.xlu0 %1378
        %1381 = vset.pattern.permute.xlu0 2
        %1382 = vperm.xlu0 %1381, %v402
        %v1383 = vpop.permute.xlu0 %1382
        %1385 = vset.pattern.permute.xlu0 2
        %1386 = vperm.xlu0 %1385, %v403
        %v1387 = vpop.permute.xlu0 %1386
        %1389 = vset.pattern.permute.xlu0 2
        %1390 = vperm.xlu0 %1389, %v404
        %v1391 = vpop.permute.xlu0 %1390
        %1393 = vset.pattern.permute.xlu0 2
        %1394 = vperm.xlu0 %1393, %v405
        %v1395 = vpop.permute.xlu0 %1394
        %1397 = vset.pattern.permute.xlu0 2
        %1398 = vperm.xlu0 %1397, %v406
        %v1399 = vpop.permute.xlu0 %1398
        %1401 = vset.pattern.permute.xlu0 2
        %1402 = vperm.xlu0 %1401, %v407
        %v1403 = vpop.permute.xlu0 %1402
        %1405 = vset.pattern.permute.xlu0 2
        %1406 = vperm.xlu0 %1405, %v408
        %v1407 = vpop.permute.xlu0 %1406
        %1409 = vset.pattern.permute.xlu0 2
        %1410 = vperm.xlu0 %1409, %v409
        %v1411 = vpop.permute.xlu0 %1410
        %1413 = vset.pattern.permute.xlu0 2
        %1414 = vperm.xlu0 %1413, %v410
        %v1415 = vpop.permute.xlu0 %1414
        %1417 = vset.pattern.permute.xlu0 2
        %1418 = vperm.xlu0 %1417, %v411
        %v1419 = vpop.permute.xlu0 %1418
        %1421 = vset.pattern.permute.xlu0 2
        %1422 = vperm.xlu0 %1421, %v412
        %v1423 = vpop.permute.xlu0 %1422
        %1425 = vset.pattern.permute.xlu0 2
        %1426 = vperm.xlu0 %1425, %v413
        %v1427 = vpop.permute.xlu0 %1426
        %1429 = vset.pattern.permute.xlu0 2
        %1430 = vperm.xlu0 %1429, %v414
        %v1431 = vpop.permute.xlu0 %1430
        %1433 = vset.pattern.permute.xlu0 2
        %1434 = vperm.xlu0 %1433, %v415
        %v1435 = vpop.permute.xlu0 %1434
        %1437 = vset.pattern.permute.xlu0 2
        %1438 = vperm.xlu0 %1437, %v416
        %v1439 = vpop.permute.xlu0 %1438
        %1441 = vset.pattern.permute.xlu0 2
        %1442 = vperm.xlu0 %1441, %v417
        %v1443 = vpop.permute.xlu0 %1442
        %v1445 = vperm.slane %v418, 2
        %v1446 = vmul.f32 %v1191, %v1445
        %v1447 = vmul.f32 %v1195, %v1445
        %v1448 = vmul.f32 %v1199, %v1445
        %v1449 = vmul.f32 %v1203, %v1445
        %v1450 = vmul.f32 %v1207, %v1445
        %v1451 = vmul.f32 %v1211, %v1445
        %v1452 = vmul.f32 %v1215, %v1445
        %v1453 = vmul.f32 %v1219, %v1445
        %v1454 = vmul.f32 %v1223, %v1445
        %v1455 = vmul.f32 %v1227, %v1445
        %v1456 = vmul.f32 %v1231, %v1445
        %v1457 = vmul.f32 %v1235, %v1445
        %v1458 = vmul.f32 %v1239, %v1445
        %v1459 = vmul.f32 %v1243, %v1445
        %v1460 = vmul.f32 %v1247, %v1445
        %v1461 = vmul.f32 %v1251, %v1445
        %v1462 = vmul.f32 %v1255, %v1445
        %v1463 = vmul.f32 %v1259, %v1445
        %v1464 = vmul.f32 %v1263, %v1445
        %v1465 = vmul.f32 %v1267, %v1445
        %v1466 = vmul.f32 %v1271, %v1445
        %v1467 = vmul.f32 %v1275, %v1445
        %v1468 = vmul.f32 %v1279, %v1445
        %v1469 = vmul.f32 %v1283, %v1445
        %v1470 = vmul.f32 %v1287, %v1445
        %v1471 = vmul.f32 %v1291, %v1445
        %v1472 = vmul.f32 %v1295, %v1445
        %v1473 = vmul.f32 %v1299, %v1445
        %v1474 = vmul.f32 %v1303, %v1445
        %v1475 = vmul.f32 %v1307, %v1445
        %v1476 = vmul.f32 %v1311, %v1445
        %v1477 = vmul.f32 %v1315, %v1445
        %v1478 = vmul.f32 %v1319, %v1445
        %v1479 = vmul.f32 %v1323, %v1445
        %v1480 = vmul.f32 %v1327, %v1445
        %v1481 = vmul.f32 %v1331, %v1445
        %v1482 = vmul.f32 %v1335, %v1445
        %v1483 = vmul.f32 %v1339, %v1445
        %v1484 = vmul.f32 %v1343, %v1445
        %v1485 = vmul.f32 %v1347, %v1445
        %v1486 = vmul.f32 %v1351, %v1445
        %v1487 = vmul.f32 %v1355, %v1445
        %v1488 = vmul.f32 %v1359, %v1445
        %v1489 = vmul.f32 %v1363, %v1445
        %v1490 = vmul.f32 %v1367, %v1445
        %v1491 = vmul.f32 %v1371, %v1445
        %v1492 = vmul.f32 %v1375, %v1445
        %v1493 = vmul.f32 %v1379, %v1445
        %v1494 = vmul.f32 %v1383, %v1445
        %v1495 = vmul.f32 %v1387, %v1445
        %v1496 = vmul.f32 %v1391, %v1445
        %v1497 = vmul.f32 %v1395, %v1445
        %v1498 = vmul.f32 %v1399, %v1445
        %v1499 = vmul.f32 %v1403, %v1445
        %v1500 = vmul.f32 %v1407, %v1445
        %v1501 = vmul.f32 %v1411, %v1445
        %v1502 = vmul.f32 %v1415, %v1445
        %v1503 = vmul.f32 %v1419, %v1445
        %v1504 = vmul.f32 %v1423, %v1445
        %v1505 = vmul.f32 %v1427, %v1445
        %v1506 = vmul.f32 %v1431, %v1445
        %v1507 = vmul.f32 %v1435, %v1445
        %v1508 = vmul.f32 %v1439, %v1445
        %v1509 = vmul.f32 %v1443, %v1445
        %v1510 = vadd.f32 %v1125, %v1446
        %v1511 = vadd.f32 %v1126, %v1447
        %v1512 = vadd.f32 %v1127, %v1448
        %v1513 = vadd.f32 %v1128, %v1449
        %v1514 = vadd.f32 %v1129, %v1450
        %v1515 = vadd.f32 %v1130, %v1451
        %v1516 = vadd.f32 %v1131, %v1452
        %v1517 = vadd.f32 %v1132, %v1453
        %v1518 = vadd.f32 %v1133, %v1454
        %v1519 = vadd.f32 %v1134, %v1455
        %v1520 = vadd.f32 %v1135, %v1456
        %v1521 = vadd.f32 %v1136, %v1457
        %v1522 = vadd.f32 %v1137, %v1458
        %v1523 = vadd.f32 %v1138, %v1459
        %v1524 = vadd.f32 %v1139, %v1460
        %v1525 = vadd.f32 %v1140, %v1461
        %v1526 = vadd.f32 %v1141, %v1462
        %v1527 = vadd.f32 %v1142, %v1463
        %v1528 = vadd.f32 %v1143, %v1464
        %v1529 = vadd.f32 %v1144, %v1465
        %v1530 = vadd.f32 %v1145, %v1466
        %v1531 = vadd.f32 %v1146, %v1467
        %v1532 = vadd.f32 %v1147, %v1468
        %v1533 = vadd.f32 %v1148, %v1469
        %v1534 = vadd.f32 %v1149, %v1470
        %v1535 = vadd.f32 %v1150, %v1471
        %v1536 = vadd.f32 %v1151, %v1472
        %v1537 = vadd.f32 %v1152, %v1473
        %v1538 = vadd.f32 %v1153, %v1474
        %v1539 = vadd.f32 %v1154, %v1475
        %v1540 = vadd.f32 %v1155, %v1476
        %v1541 = vadd.f32 %v1156, %v1477
        %v1542 = vadd.f32 %v1157, %v1478
        %v1543 = vadd.f32 %v1158, %v1479
        %v1544 = vadd.f32 %v1159, %v1480
        %v1545 = vadd.f32 %v1160, %v1481
        %v1546 = vadd.f32 %v1161, %v1482
        %v1547 = vadd.f32 %v1162, %v1483
        %v1548 = vadd.f32 %v1163, %v1484
        %v1549 = vadd.f32 %v1164, %v1485
        %v1550 = vadd.f32 %v1165, %v1486
        %v1551 = vadd.f32 %v1166, %v1487
        %v1552 = vadd.f32 %v1167, %v1488
        %v1553 = vadd.f32 %v1168, %v1489
        %v1554 = vadd.f32 %v1169, %v1490
        %v1555 = vadd.f32 %v1170, %v1491
        %v1556 = vadd.f32 %v1171, %v1492
        %v1557 = vadd.f32 %v1172, %v1493
        %v1558 = vadd.f32 %v1173, %v1494
        %v1559 = vadd.f32 %v1174, %v1495
        %v1560 = vadd.f32 %v1175, %v1496
        %v1561 = vadd.f32 %v1176, %v1497
        %v1562 = vadd.f32 %v1177, %v1498
        %v1563 = vadd.f32 %v1178, %v1499
        %v1564 = vadd.f32 %v1179, %v1500
        %v1565 = vadd.f32 %v1180, %v1501
        %v1566 = vadd.f32 %v1181, %v1502
        %v1567 = vadd.f32 %v1182, %v1503
        %v1568 = vadd.f32 %v1183, %v1504
        %v1569 = vadd.f32 %v1184, %v1505
        %v1570 = vadd.f32 %v1185, %v1506
        %v1571 = vadd.f32 %v1186, %v1507
        %v1572 = vadd.f32 %v1187, %v1508
        %v1573 = vadd.f32 %v1188, %v1509
        %v1574 = vld [vmem:[%s2] sm:$0x1]
        %v1576 = vperm.slane %v1574, 0
        %v1578 = vadd.f32 %v1510, %v1576
        %v1579 = vadd.f32 %v1511, %v1576
        %v1580 = vadd.f32 %v1512, %v1576
        %v1581 = vadd.f32 %v1513, %v1576
        %v1582 = vadd.f32 %v1514, %v1576
        %v1583 = vadd.f32 %v1515, %v1576
        %v1584 = vadd.f32 %v1516, %v1576
        %v1585 = vadd.f32 %v1517, %v1576
        %v1586 = vadd.f32 %v1518, %v1576
        %v1587 = vadd.f32 %v1519, %v1576
        %v1588 = vadd.f32 %v1520, %v1576
        %v1589 = vadd.f32 %v1521, %v1576
        %v1590 = vadd.f32 %v1522, %v1576
        %v1591 = vadd.f32 %v1523, %v1576
        %v1592 = vadd.f32 %v1524, %v1576
        %v1593 = vadd.f32 %v1525, %v1576
        %v1594 = vadd.f32 %v1526, %v1576
        %v1595 = vadd.f32 %v1527, %v1576
        %v1596 = vadd.f32 %v1528, %v1576
        %v1597 = vadd.f32 %v1529, %v1576
        %v1598 = vadd.f32 %v1530, %v1576
        %v1599 = vadd.f32 %v1531, %v1576
        %v1600 = vadd.f32 %v1532, %v1576
        %v1601 = vadd.f32 %v1533, %v1576
        %v1602 = vadd.f32 %v1534, %v1576
        %v1603 = vadd.f32 %v1535, %v1576
        %v1604 = vadd.f32 %v1536, %v1576
        %v1605 = vadd.f32 %v1537, %v1576
        %v1606 = vadd.f32 %v1538, %v1576
        %v1607 = vadd.f32 %v1539, %v1576
        %v1608 = vadd.f32 %v1540, %v1576
        %v1609 = vadd.f32 %v1541, %v1576
        %v1610 = vadd.f32 %v1542, %v1576
        %v1611 = vadd.f32 %v1543, %v1576
        %v1612 = vadd.f32 %v1544, %v1576
        %v1613 = vadd.f32 %v1545, %v1576
        %v1614 = vadd.f32 %v1546, %v1576
        %v1615 = vadd.f32 %v1547, %v1576
        %v1616 = vadd.f32 %v1548, %v1576
        %v1617 = vadd.f32 %v1549, %v1576
        %v1618 = vadd.f32 %v1550, %v1576
        %v1619 = vadd.f32 %v1551, %v1576
        %v1620 = vadd.f32 %v1552, %v1576
        %v1621 = vadd.f32 %v1553, %v1576
        %v1622 = vadd.f32 %v1554, %v1576
        %v1623 = vadd.f32 %v1555, %v1576
        %v1624 = vadd.f32 %v1556, %v1576
        %v1625 = vadd.f32 %v1557, %v1576
        %v1626 = vadd.f32 %v1558, %v1576
        %v1627 = vadd.f32 %v1559, %v1576
        %v1628 = vadd.f32 %v1560, %v1576
        %v1629 = vadd.f32 %v1561, %v1576
        %v1630 = vadd.f32 %v1562, %v1576
        %v1631 = vadd.f32 %v1563, %v1576
        %v1632 = vadd.f32 %v1564, %v1576
        %v1633 = vadd.f32 %v1565, %v1576
        %v1634 = vadd.f32 %v1566, %v1576
        %v1635 = vadd.f32 %v1567, %v1576
        %v1636 = vadd.f32 %v1568, %v1576
        %v1637 = vadd.f32 %v1569, %v1576
        %v1638 = vadd.f32 %v1570, %v1576
        %v1639 = vadd.f32 %v1571, %v1576
        %v1640 = vadd.f32 %v1572, %v1576
        %v1641 = vadd.f32 %v1573, %v1576
        %v1642 = vmax.f32 %v1578, 0.0
        %v1643 = vmax.f32 %v1579, 0.0
        %v1644 = vmax.f32 %v1580, 0.0
        %v1645 = vmax.f32 %v1581, 0.0
        %v1646 = vmax.f32 %v1582, 0.0
        %v1647 = vmax.f32 %v1583, 0.0
        %v1648 = vmax.f32 %v1584, 0.0
        %v1649 = vmax.f32 %v1585, 0.0
        %v1650 = vmax.f32 %v1586, 0.0
        %v1651 = vmax.f32 %v1587, 0.0
        %v1652 = vmax.f32 %v1588, 0.0
        %v1653 = vmax.f32 %v1589, 0.0
        %v1654 = vmax.f32 %v1590, 0.0
        %v1655 = vmax.f32 %v1591, 0.0
        %v1656 = vmax.f32 %v1592, 0.0
        %v1657 = vmax.f32 %v1593, 0.0
        %v1658 = vmax.f32 %v1594, 0.0
        %v1659 = vmax.f32 %v1595, 0.0
        %v1660 = vmax.f32 %v1596, 0.0
        %v1661 = vmax.f32 %v1597, 0.0
        %v1662 = vmax.f32 %v1598, 0.0
        %v1663 = vmax.f32 %v1599, 0.0
        %v1664 = vmax.f32 %v1600, 0.0
        %v1665 = vmax.f32 %v1601, 0.0
        %v1666 = vmax.f32 %v1602, 0.0
        %v1667 = vmax.f32 %v1603, 0.0
        %v1668 = vmax.f32 %v1604, 0.0
        %v1669 = vmax.f32 %v1605, 0.0
        %v1670 = vmax.f32 %v1606, 0.0
        %v1671 = vmax.f32 %v1607, 0.0
        %v1672 = vmax.f32 %v1608, 0.0
        %v1673 = vmax.f32 %v1609, 0.0
        %v1674 = vmax.f32 %v1610, 0.0
        %v1675 = vmax.f32 %v1611, 0.0
        %v1676 = vmax.f32 %v1612, 0.0
        %v1677 = vmax.f32 %v1613, 0.0
        %v1678 = vmax.f32 %v1614, 0.0
        %v1679 = vmax.f32 %v1615, 0.0
        %v1680 = vmax.f32 %v1616, 0.0
        %v1681 = vmax.f32 %v1617, 0.0
        %v1682 = vmax.f32 %v1618, 0.0
        %v1683 = vmax.f32 %v1619, 0.0
        %v1684 = vmax.f32 %v1620, 0.0
        %v1685 = vmax.f32 %v1621, 0.0
        %v1686 = vmax.f32 %v1622, 0.0
        %v1687 = vmax.f32 %v1623, 0.0
        %v1688 = vmax.f32 %v1624, 0.0
        %v1689 = vmax.f32 %v1625, 0.0
        %v1690 = vmax.f32 %v1626, 0.0
        %v1691 = vmax.f32 %v1627, 0.0
        %v1692 = vmax.f32 %v1628, 0.0
        %v1693 = vmax.f32 %v1629, 0.0
        %v1694 = vmax.f32 %v1630, 0.0
        %v1695 = vmax.f32 %v1631, 0.0
        %v1696 = vmax.f32 %v1632, 0.0
        %v1697 = vmax.f32 %v1633, 0.0
        %v1698 = vmax.f32 %v1634, 0.0
        %v1699 = vmax.f32 %v1635, 0.0
        %v1700 = vmax.f32 %v1636, 0.0
        %v1701 = vmax.f32 %v1637, 0.0
        %v1702 = vmax.f32 %v1638, 0.0
        %v1703 = vmax.f32 %v1639, 0.0
        %v1704 = vmax.f32 %v1640, 0.0
        %v1705 = vmax.f32 %v1641, 0.0
        %v1706 = vld [vmem:[%s3] sm:$0xff]
        %v1707 = vld [vmem:[%s3 + $0x8] sm:$0xff]
        %v1708 = vld [vmem:[%s3 + $0x10] sm:$0xff]
        %v1709 = vld [vmem:[%s3 + $0x18] sm:$0xff]
        %v1710 = vld [vmem:[%s4] sm:$0x1]
        %v1712 = vperm.slane %v1710, 0
        %vm1714 = vcmask 261120
        %v1716 = vsel %vm1714, %v1642, 0
        %v1719 = vsel %vm1714, %v1643, 0
        %v1722 = vsel %vm1714, %v1644, 0
        %v1725 = vsel %vm1714, %v1645, 0
        %v1728 = vsel %vm1714, %v1646, 0
        %v1731 = vsel %vm1714, %v1647, 0
        %v1734 = vsel %vm1714, %v1648, 0
        %v1737 = vsel %vm1714, %v1649, 0
        %v1740 = vsel %vm1714, %v1650, 0
        %v1743 = vsel %vm1714, %v1651, 0
        %v1746 = vsel %vm1714, %v1652, 0
        %v1749 = vsel %vm1714, %v1653, 0
        %v1752 = vsel %vm1714, %v1654, 0
        %v1755 = vsel %vm1714, %v1655, 0
        %v1758 = vsel %vm1714, %v1656, 0
        %v1761 = vsel %vm1714, %v1657, 0
        %v1764 = vsel %vm1714, %v1658, 0
        %v1767 = vsel %vm1714, %v1659, 0
        %v1770 = vsel %vm1714, %v1660, 0
        %v1773 = vsel %vm1714, %v1661, 0
        %v1776 = vsel %vm1714, %v1662, 0
        %v1779 = vsel %vm1714, %v1663, 0
        %v1782 = vsel %vm1714, %v1664, 0
        %v1785 = vsel %vm1714, %v1665, 0
        %v1788 = vsel %vm1714, %v1666, 0
        %v1791 = vsel %vm1714, %v1667, 0
        %v1794 = vsel %vm1714, %v1668, 0
        %v1797 = vsel %vm1714, %v1669, 0
        %v1800 = vsel %vm1714, %v1670, 0
        %v1803 = vsel %vm1714, %v1671, 0
        %v1806 = vsel %vm1714, %v1672, 0
        %v1809 = vsel %vm1714, %v1673, 0
        %v1812 = vsel %vm1714, %v1674, 0
        %v1815 = vsel %vm1714, %v1675, 0
        %v1818 = vsel %vm1714, %v1676, 0
        %v1821 = vsel %vm1714, %v1677, 0
        %v1824 = vsel %vm1714, %v1678, 0
        %v1827 = vsel %vm1714, %v1679, 0
        %v1830 = vsel %vm1714, %v1680, 0
        %v1833 = vsel %vm1714, %v1681, 0
        %v1836 = vsel %vm1714, %v1682, 0
        %v1839 = vsel %vm1714, %v1683, 0
        %v1842 = vsel %vm1714, %v1684, 0
        %v1845 = vsel %vm1714, %v1685, 0
        %v1848 = vsel %vm1714, %v1686, 0
        %v1851 = vsel %vm1714, %v1687, 0
        %v1854 = vsel %vm1714, %v1688, 0
        %v1857 = vsel %vm1714, %v1689, 0
        %v1860 = vsel %vm1714, %v1690, 0
        %v1863 = vsel %vm1714, %v1691, 0
        %v1866 = vsel %vm1714, %v1692, 0
        %v1869 = vsel %vm1714, %v1693, 0
        %v1872 = vsel %vm1714, %v1694, 0
        %v1875 = vsel %vm1714, %v1695, 0
        %v1878 = vsel %vm1714, %v1696, 0
        %v1881 = vsel %vm1714, %v1697, 0
        %v1884 = vsel %vm1714, %v1698, 0
        %v1887 = vsel %vm1714, %v1699, 0
        %v1890 = vsel %vm1714, %v1700, 0
        %v1893 = vsel %vm1714, %v1701, 0
        %v1896 = vsel %vm1714, %v1702, 0
        %v1899 = vsel %vm1714, %v1703, 0
        %v1902 = vsel %vm1714, %v1704, 0
        %v1905 = vsel %vm1714, %v1705, 0
        %1907 = vmatpush.msra.mxu0 0.0
        %1908 = vmatpush.msra.mxu0 0.0
        %1909 = vmatpush.msra.mxu0 0.0
        %1910 = vmatpush.msra.mxu0 0.0
        %1911 = vmatpush.msra.mxu0 0.0
        %1912 = vmatpush.msra.mxu0 0.0
        %1913 = vmatpush.msra.mxu0 0.0
        %1914 = vmatpush.msra.mxu0 0.0
        %1915 = vmatpush.msra.mxu0 0.0
        %1916 = vmatpush.msra.mxu0 0.0
        %1917 = vmatpush.msra.mxu0 0.0
        %1918 = vmatpush.msra.mxu0 0.0
        %1919 = vmatpush.msra.mxu0 %v1709
        %1920 = vmatpush.msra.mxu0 %v1708
        %1921 = vmatpush.msra.mxu0 %v1707
        %1922 = vmatpush.msra.mxu0 %v1706
        %1923 = vmatmul.f32.gmra.mxu0 %v1716
        %v1924 = vpop.f32.mrf.mxu0
        %v1925 = vadd.f32 %v1712, %v1924
        %1926 = vmatmul.f32.gmra.mxu0 %v1719
        %v1927 = vpop.f32.mrf.mxu0
        %v1928 = vadd.f32 %v1712, %v1927
        %1929 = vmatmul.f32.gmra.mxu0 %v1722
        %v1930 = vpop.f32.mrf.mxu0
        %v1931 = vadd.f32 %v1712, %v1930
        %1932 = vmatmul.f32.gmra.mxu0 %v1725
        %v1933 = vpop.f32.mrf.mxu0
        %v1934 = vadd.f32 %v1712, %v1933
        %1935 = vmatmul.f32.gmra.mxu0 %v1728
        %v1936 = vpop.f32.mrf.mxu0
        %v1937 = vadd.f32 %v1712, %v1936
        %1938 = vmatmul.f32.gmra.mxu0 %v1731
        %v1939 = vpop.f32.mrf.mxu0
        %v1940 = vadd.f32 %v1712, %v1939
        %1941 = vmatmul.f32.gmra.mxu0 %v1734
        %v1942 = vpop.f32.mrf.mxu0
        %v1943 = vadd.f32 %v1712, %v1942
        %1944 = vmatmul.f32.gmra.mxu0 %v1737
        %v1945 = vpop.f32.mrf.mxu0
        %v1946 = vadd.f32 %v1712, %v1945
        %1947 = vmatmul.f32.gmra.mxu0 %v1740
        %v1948 = vpop.f32.mrf.mxu0
        %v1949 = vadd.f32 %v1712, %v1948
        %1950 = vmatmul.f32.gmra.mxu0 %v1743
        %v1951 = vpop.f32.mrf.mxu0
        %v1952 = vadd.f32 %v1712, %v1951
        %1953 = vmatmul.f32.gmra.mxu0 %v1746
        %v1954 = vpop.f32.mrf.mxu0
        %v1955 = vadd.f32 %v1712, %v1954
        %1956 = vmatmul.f32.gmra.mxu0 %v1749
        %v1957 = vpop.f32.mrf.mxu0
        %v1958 = vadd.f32 %v1712, %v1957
        %1959 = vmatmul.f32.gmra.mxu0 %v1752
        %v1960 = vpop.f32.mrf.mxu0
        %v1961 = vadd.f32 %v1712, %v1960
        %1962 = vmatmul.f32.gmra.mxu0 %v1755
        %v1963 = vpop.f32.mrf.mxu0
        %v1964 = vadd.f32 %v1712, %v1963
        %1965 = vmatmul.f32.gmra.mxu0 %v1758
        %v1966 = vpop.f32.mrf.mxu0
        %v1967 = vadd.f32 %v1712, %v1966
        %1968 = vmatmul.f32.gmra.mxu0 %v1761
        %v1969 = vpop.f32.mrf.mxu0
        %v1970 = vadd.f32 %v1712, %v1969
        %1971 = vmatmul.f32.gmra.mxu0 %v1764
        %v1972 = vpop.f32.mrf.mxu0
        %v1973 = vadd.f32 %v1712, %v1972
        %1974 = vmatmul.f32.gmra.mxu0 %v1767
        %v1975 = vpop.f32.mrf.mxu0
        %v1976 = vadd.f32 %v1712, %v1975
        %1977 = vmatmul.f32.gmra.mxu0 %v1770
        %v1978 = vpop.f32.mrf.mxu0
        %v1979 = vadd.f32 %v1712, %v1978
        %1980 = vmatmul.f32.gmra.mxu0 %v1773
        %v1981 = vpop.f32.mrf.mxu0
        %v1982 = vadd.f32 %v1712, %v1981
        %1983 = vmatmul.f32.gmra.mxu0 %v1776
        %v1984 = vpop.f32.mrf.mxu0
        %v1985 = vadd.f32 %v1712, %v1984
        %1986 = vmatmul.f32.gmra.mxu0 %v1779
        %v1987 = vpop.f32.mrf.mxu0
        %v1988 = vadd.f32 %v1712, %v1987
        %1989 = vmatmul.f32.gmra.mxu0 %v1782
        %v1990 = vpop.f32.mrf.mxu0
        %v1991 = vadd.f32 %v1712, %v1990
        %1992 = vmatmul.f32.gmra.mxu0 %v1785
        %v1993 = vpop.f32.mrf.mxu0
        %v1994 = vadd.f32 %v1712, %v1993
        %1995 = vmatmul.f32.gmra.mxu0 %v1788
        %v1996 = vpop.f32.mrf.mxu0
        %v1997 = vadd.f32 %v1712, %v1996
        %1998 = vmatmul.f32.gmra.mxu0 %v1791
        %v1999 = vpop.f32.mrf.mxu0
        %v2000 = vadd.f32 %v1712, %v1999
        %2001 = vmatmul.f32.gmra.mxu0 %v1794
        %v2002 = vpop.f32.mrf.mxu0
        %v2003 = vadd.f32 %v1712, %v2002
        %2004 = vmatmul.f32.gmra.mxu0 %v1797
        %v2005 = vpop.f32.mrf.mxu0
        %v2006 = vadd.f32 %v1712, %v2005
        %2007 = vmatmul.f32.gmra.mxu0 %v1800
        %v2008 = vpop.f32.mrf.mxu0
        %v2009 = vadd.f32 %v1712, %v2008
        %2010 = vmatmul.f32.gmra.mxu0 %v1803
        %v2011 = vpop.f32.mrf.mxu0
        %v2012 = vadd.f32 %v1712, %v2011
        %2013 = vmatmul.f32.gmra.mxu0 %v1806
        %v2014 = vpop.f32.mrf.mxu0
        %v2015 = vadd.f32 %v1712, %v2014
        %2016 = vmatmul.f32.gmra.mxu0 %v1809
        %v2017 = vpop.f32.mrf.mxu0
        %v2018 = vadd.f32 %v1712, %v2017
        %2019 = vmatmul.f32.gmra.mxu0 %v1812
        %v2020 = vpop.f32.mrf.mxu0
        %v2021 = vadd.f32 %v1712, %v2020
        %2022 = vmatmul.f32.gmra.mxu0 %v1815
        %v2023 = vpop.f32.mrf.mxu0
        %v2024 = vadd.f32 %v1712, %v2023
        %2025 = vmatmul.f32.gmra.mxu0 %v1818
        %v2026 = vpop.f32.mrf.mxu0
        %v2027 = vadd.f32 %v1712, %v2026
        %2028 = vmatmul.f32.gmra.mxu0 %v1821
        %v2029 = vpop.f32.mrf.mxu0
        %v2030 = vadd.f32 %v1712, %v2029
        %2031 = vmatmul.f32.gmra.mxu0 %v1824
        %v2032 = vpop.f32.mrf.mxu0
        %v2033 = vadd.f32 %v1712, %v2032
        %2034 = vmatmul.f32.gmra.mxu0 %v1827
        %v2035 = vpop.f32.mrf.mxu0
        %v2036 = vadd.f32 %v1712, %v2035
        %2037 = vmatmul.f32.gmra.mxu0 %v1830
        %v2038 = vpop.f32.mrf.mxu0
        %v2039 = vadd.f32 %v1712, %v2038
        %2040 = vmatmul.f32.gmra.mxu0 %v1833
        %v2041 = vpop.f32.mrf.mxu0
        %v2042 = vadd.f32 %v1712, %v2041
        %2043 = vmatmul.f32.gmra.mxu0 %v1836
        %v2044 = vpop.f32.mrf.mxu0
        %v2045 = vadd.f32 %v1712, %v2044
        %2046 = vmatmul.f32.gmra.mxu0 %v1839
        %v2047 = vpop.f32.mrf.mxu0
        %v2048 = vadd.f32 %v1712, %v2047
        %2049 = vmatmul.f32.gmra.mxu0 %v1842
        %v2050 = vpop.f32.mrf.mxu0
        %v2051 = vadd.f32 %v1712, %v2050
        %2052 = vmatmul.f32.gmra.mxu0 %v1845
        %v2053 = vpop.f32.mrf.mxu0
        %v2054 = vadd.f32 %v1712, %v2053
        %2055 = vmatmul.f32.gmra.mxu0 %v1848
        %v2056 = vpop.f32.mrf.mxu0
        %v2057 = vadd.f32 %v1712, %v2056
        %2058 = vmatmul.f32.gmra.mxu0 %v1851
        %v2059 = vpop.f32.mrf.mxu0
        %v2060 = vadd.f32 %v1712, %v2059
        %2061 = vmatmul.f32.gmra.mxu0 %v1854
        %v2062 = vpop.f32.mrf.mxu0
        %v2063 = vadd.f32 %v1712, %v2062
        %2064 = vmatmul.f32.gmra.mxu0 %v1857
        %v2065 = vpop.f32.mrf.mxu0
        %v2066 = vadd.f32 %v1712, %v2065
        %2067 = vmatmul.f32.gmra.mxu0 %v1860
        %v2068 = vpop.f32.mrf.mxu0
        %v2069 = vadd.f32 %v1712, %v2068
        %2070 = vmatmul.f32.gmra.mxu0 %v1863
        %v2071 = vpop.f32.mrf.mxu0
        %v2072 = vadd.f32 %v1712, %v2071
        %2073 = vmatmul.f32.gmra.mxu0 %v1866
        %v2074 = vpop.f32.mrf.mxu0
        %v2075 = vadd.f32 %v1712, %v2074
        %2076 = vmatmul.f32.gmra.mxu0 %v1869
        %v2077 = vpop.f32.mrf.mxu0
        %v2078 = vadd.f32 %v1712, %v2077
        %2079 = vmatmul.f32.gmra.mxu0 %v1872
        %v2080 = vpop.f32.mrf.mxu0
        %v2081 = vadd.f32 %v1712, %v2080
        %2082 = vmatmul.f32.gmra.mxu0 %v1875
        %v2083 = vpop.f32.mrf.mxu0
        %v2084 = vadd.f32 %v1712, %v2083
        %2085 = vmatmul.f32.gmra.mxu0 %v1878
        %v2086 = vpop.f32.mrf.mxu0
        %v2087 = vadd.f32 %v1712, %v2086
        %2088 = vmatmul.f32.gmra.mxu0 %v1881
        %v2089 = vpop.f32.mrf.mxu0
        %v2090 = vadd.f32 %v1712, %v2089
        %2091 = vmatmul.f32.gmra.mxu0 %v1884
        %v2092 = vpop.f32.mrf.mxu0
        %v2093 = vadd.f32 %v1712, %v2092
        %2094 = vmatmul.f32.gmra.mxu0 %v1887
        %v2095 = vpop.f32.mrf.mxu0
        %v2096 = vadd.f32 %v1712, %v2095
        %2097 = vmatmul.f32.gmra.mxu0 %v1890
        %v2098 = vpop.f32.mrf.mxu0
        %v2099 = vadd.f32 %v1712, %v2098
        %2100 = vmatmul.f32.gmra.mxu0 %v1893
        %v2101 = vpop.f32.mrf.mxu0
        %v2102 = vadd.f32 %v1712, %v2101
        %2103 = vmatmul.f32.gmra.mxu0 %v1896
        %v2104 = vpop.f32.mrf.mxu0
        %v2105 = vadd.f32 %v1712, %v2104
        %2106 = vmatmul.f32.gmra.mxu0 %v1899
        %v2107 = vpop.f32.mrf.mxu0
        %v2108 = vadd.f32 %v1712, %v2107
        %2109 = vmatmul.f32.gmra.mxu0 %v1902
        %v2110 = vpop.f32.mrf.mxu0
        %v2111 = vadd.f32 %v1712, %v2110
        %2112 = vmatmul.f32.gmra.mxu0 %v1905
        %v2113 = vpop.f32.mrf.mxu0
        %v2114 = vadd.f32 %v1712, %v2113
        %2115 = vdwg.mxu0
        %v2116 = vmax.f32 %v1925, 0.0
        %v2117 = vmax.f32 %v1928, 0.0
        %v2118 = vmax.f32 %v1931, 0.0
        %v2119 = vmax.f32 %v1934, 0.0
        %v2120 = vmax.f32 %v1937, 0.0
        %v2121 = vmax.f32 %v1940, 0.0
        %v2122 = vmax.f32 %v1943, 0.0
        %v2123 = vmax.f32 %v1946, 0.0
        %v2124 = vmax.f32 %v1949, 0.0
        %v2125 = vmax.f32 %v1952, 0.0
        %v2126 = vmax.f32 %v1955, 0.0
        %v2127 = vmax.f32 %v1958, 0.0
        %v2128 = vmax.f32 %v1961, 0.0
        %v2129 = vmax.f32 %v1964, 0.0
        %v2130 = vmax.f32 %v1967, 0.0
        %v2131 = vmax.f32 %v1970, 0.0
        %v2132 = vmax.f32 %v1973, 0.0
        %v2133 = vmax.f32 %v1976, 0.0
        %v2134 = vmax.f32 %v1979, 0.0
        %v2135 = vmax.f32 %v1982, 0.0
        %v2136 = vmax.f32 %v1985, 0.0
        %v2137 = vmax.f32 %v1988, 0.0
        %v2138 = vmax.f32 %v1991, 0.0
        %v2139 = vmax.f32 %v1994, 0.0
        %v2140 = vmax.f32 %v1997, 0.0
        %v2141 = vmax.f32 %v2000, 0.0
        %v2142 = vmax.f32 %v2003, 0.0
        %v2143 = vmax.f32 %v2006, 0.0
        %v2144 = vmax.f32 %v2009, 0.0
        %v2145 = vmax.f32 %v2012, 0.0
        %v2146 = vmax.f32 %v2015, 0.0
        %v2147 = vmax.f32 %v2018, 0.0
        %v2148 = vmax.f32 %v2021, 0.0
        %v2149 = vmax.f32 %v2024, 0.0
        %v2150 = vmax.f32 %v2027, 0.0
        %v2151 = vmax.f32 %v2030, 0.0
        %v2152 = vmax.f32 %v2033, 0.0
        %v2153 = vmax.f32 %v2036, 0.0
        %v2154 = vmax.f32 %v2039, 0.0
        %v2155 = vmax.f32 %v2042, 0.0
        %v2156 = vmax.f32 %v2045, 0.0
        %v2157 = vmax.f32 %v2048, 0.0
        %v2158 = vmax.f32 %v2051, 0.0
        %v2159 = vmax.f32 %v2054, 0.0
        %v2160 = vmax.f32 %v2057, 0.0
        %v2161 = vmax.f32 %v2060, 0.0
        %v2162 = vmax.f32 %v2063, 0.0
        %v2163 = vmax.f32 %v2066, 0.0
        %v2164 = vmax.f32 %v2069, 0.0
        %v2165 = vmax.f32 %v2072, 0.0
        %v2166 = vmax.f32 %v2075, 0.0
        %v2167 = vmax.f32 %v2078, 0.0
        %v2168 = vmax.f32 %v2081, 0.0
        %v2169 = vmax.f32 %v2084, 0.0
        %v2170 = vmax.f32 %v2087, 0.0
        %v2171 = vmax.f32 %v2090, 0.0
        %v2172 = vmax.f32 %v2093, 0.0
        %v2173 = vmax.f32 %v2096, 0.0
        %v2174 = vmax.f32 %v2099, 0.0
        %v2175 = vmax.f32 %v2102, 0.0
        %v2176 = vmax.f32 %v2105, 0.0
        %v2177 = vmax.f32 %v2108, 0.0
        %v2178 = vmax.f32 %v2111, 0.0
        %v2179 = vmax.f32 %v2114, 0.0
        %v2180 = vld [vmem:[%s5] sm:$0xff]
        %v2181 = vld [vmem:[%s5 + $0x8] sm:$0xff]
        %v2182 = vld [vmem:[%s5 + $0x10] sm:$0xff]
        %v2183 = vld [vmem:[%s5 + $0x18] sm:$0xff]
        %v2184 = vld [vmem:[%s5 + $0x20] sm:$0xff]
        %v2185 = vld [vmem:[%s5 + $0x28] sm:$0xff]
        %v2186 = vld [vmem:[%s5 + $0x30] sm:$0xff]
        %v2187 = vld [vmem:[%s5 + $0x38] sm:$0xff]
        %v2188 = vld [vmem:[%s6] sm:$0x1]
        %v2190 = vperm.slane %v2188, 0
        %vm2192 = vcmask 523264
        %v2194 = vsel %vm2192, %v2116, 0
        %v2197 = vsel %vm2192, %v2117, 0
        %v2200 = vsel %vm2192, %v2118, 0
        %v2203 = vsel %vm2192, %v2119, 0
        %v2206 = vsel %vm2192, %v2120, 0
        %v2209 = vsel %vm2192, %v2121, 0
        %v2212 = vsel %vm2192, %v2122, 0
        %v2215 = vsel %vm2192, %v2123, 0
        %v2218 = vsel %vm2192, %v2124, 0
        %v2221 = vsel %vm2192, %v2125, 0
        %v2224 = vsel %vm2192, %v2126, 0
        %v2227 = vsel %vm2192, %v2127, 0
        %v2230 = vsel %vm2192, %v2128, 0
        %v2233 = vsel %vm2192, %v2129, 0
        %v2236 = vsel %vm2192, %v2130, 0
        %v2239 = vsel %vm2192, %v2131, 0
        %v2242 = vsel %vm2192, %v2132, 0
        %v2245 = vsel %vm2192, %v2133, 0
        %v2248 = vsel %vm2192, %v2134, 0
        %v2251 = vsel %vm2192, %v2135, 0
        %v2254 = vsel %vm2192, %v2136, 0
        %v2257 = vsel %vm2192, %v2137, 0
        %v2260 = vsel %vm2192, %v2138, 0
        %v2263 = vsel %vm2192, %v2139, 0
        %v2266 = vsel %vm2192, %v2140, 0
        %v2269 = vsel %vm2192, %v2141, 0
        %v2272 = vsel %vm2192, %v2142, 0
        %v2275 = vsel %vm2192, %v2143, 0
        %v2278 = vsel %vm2192, %v2144, 0
        %v2281 = vsel %vm2192, %v2145, 0
        %v2284 = vsel %vm2192, %v2146, 0
        %v2287 = vsel %vm2192, %v2147, 0
        %v2290 = vsel %vm2192, %v2148, 0
        %v2293 = vsel %vm2192, %v2149, 0
        %v2296 = vsel %vm2192, %v2150, 0
        %v2299 = vsel %vm2192, %v2151, 0
        %v2302 = vsel %vm2192, %v2152, 0
        %v2305 = vsel %vm2192, %v2153, 0
        %v2308 = vsel %vm2192, %v2154, 0
        %v2311 = vsel %vm2192, %v2155, 0
        %v2314 = vsel %vm2192, %v2156, 0
        %v2317 = vsel %vm2192, %v2157, 0
        %v2320 = vsel %vm2192, %v2158, 0
        %v2323 = vsel %vm2192, %v2159, 0
        %v2326 = vsel %vm2192, %v2160, 0
        %v2329 = vsel %vm2192, %v2161, 0
        %v2332 = vsel %vm2192, %v2162, 0
        %v2335 = vsel %vm2192, %v2163, 0
        %v2338 = vsel %vm2192, %v2164, 0
        %v2341 = vsel %vm2192, %v2165, 0
        %v2344 = vsel %vm2192, %v2166, 0
        %v2347 = vsel %vm2192, %v2167, 0
        %v2350 = vsel %vm2192, %v2168, 0
        %v2353 = vsel %vm2192, %v2169, 0
        %v2356 = vsel %vm2192, %v2170, 0
        %v2359 = vsel %vm2192, %v2171, 0
        %v2362 = vsel %vm2192, %v2172, 0
        %v2365 = vsel %vm2192, %v2173, 0
        %v2368 = vsel %vm2192, %v2174, 0
        %v2371 = vsel %vm2192, %v2175, 0
        %v2374 = vsel %vm2192, %v2176, 0
        %v2377 = vsel %vm2192, %v2177, 0
        %v2380 = vsel %vm2192, %v2178, 0
        %v2383 = vsel %vm2192, %v2179, 0
        %2385 = vmatpush.msra.mxu0 0.0
        %2386 = vmatpush.msra.mxu0 0.0
        %2387 = vmatpush.msra.mxu0 0.0
        %2388 = vmatpush.msra.mxu0 0.0
        %2389 = vmatpush.msra.mxu0 0.0
        %2390 = vmatpush.msra.mxu0 0.0
        %2391 = vmatpush.msra.mxu0 0.0
        %2392 = vmatpush.msra.mxu0 0.0
        %2393 = vmatpush.msra.mxu0 %v2187
        %2394 = vmatpush.msra.mxu0 %v2186
        %2395 = vmatpush.msra.mxu0 %v2185
        %2396 = vmatpush.msra.mxu0 %v2184
        %2397 = vmatpush.msra.mxu0 %v2183
        %2398 = vmatpush.msra.mxu0 %v2182
        %2399 = vmatpush.msra.mxu0 %v2181
        %2400 = vmatpush.msra.mxu0 %v2180
        %2401 = vmatmul.f32.gmra.mxu0 %v2194
        %v2402 = vpop.f32.mrf.mxu0
        %v2403 = vadd.f32 %v2190, %v2402
        %2404 = vmatmul.f32.gmra.mxu0 %v2197
        %v2405 = vpop.f32.mrf.mxu0
        %v2406 = vadd.f32 %v2190, %v2405
        %2407 = vmatmul.f32.gmra.mxu0 %v2200
        %v2408 = vpop.f32.mrf.mxu0
        %v2409 = vadd.f32 %v2190, %v2408
        %2410 = vmatmul.f32.gmra.mxu0 %v2203
        %v2411 = vpop.f32.mrf.mxu0
        %v2412 = vadd.f32 %v2190, %v2411
        %2413 = vmatmul.f32.gmra.mxu0 %v2206
        %v2414 = vpop.f32.mrf.mxu0
        %v2415 = vadd.f32 %v2190, %v2414
        %2416 = vmatmul.f32.gmra.mxu0 %v2209
        %v2417 = vpop.f32.mrf.mxu0
        %v2418 = vadd.f32 %v2190, %v2417
        %2419 = vmatmul.f32.gmra.mxu0 %v2212
        %v2420 = vpop.f32.mrf.mxu0
        %v2421 = vadd.f32 %v2190, %v2420
        %2422 = vmatmul.f32.gmra.mxu0 %v2215
        %v2423 = vpop.f32.mrf.mxu0
        %v2424 = vadd.f32 %v2190, %v2423
        %2425 = vmatmul.f32.gmra.mxu0 %v2218
        %v2426 = vpop.f32.mrf.mxu0
        %v2427 = vadd.f32 %v2190, %v2426
        %2428 = vmatmul.f32.gmra.mxu0 %v2221
        %v2429 = vpop.f32.mrf.mxu0
        %v2430 = vadd.f32 %v2190, %v2429
        %2431 = vmatmul.f32.gmra.mxu0 %v2224
        %v2432 = vpop.f32.mrf.mxu0
        %v2433 = vadd.f32 %v2190, %v2432
        %2434 = vmatmul.f32.gmra.mxu0 %v2227
        %v2435 = vpop.f32.mrf.mxu0
        %v2436 = vadd.f32 %v2190, %v2435
        %2437 = vmatmul.f32.gmra.mxu0 %v2230
        %v2438 = vpop.f32.mrf.mxu0
        %v2439 = vadd.f32 %v2190, %v2438
        %2440 = vmatmul.f32.gmra.mxu0 %v2233
        %v2441 = vpop.f32.mrf.mxu0
        %v2442 = vadd.f32 %v2190, %v2441
        %2443 = vmatmul.f32.gmra.mxu0 %v2236
        %v2444 = vpop.f32.mrf.mxu0
        %v2445 = vadd.f32 %v2190, %v2444
        %2446 = vmatmul.f32.gmra.mxu0 %v2239
        %v2447 = vpop.f32.mrf.mxu0
        %v2448 = vadd.f32 %v2190, %v2447
        %2449 = vmatmul.f32.gmra.mxu0 %v2242
        %v2450 = vpop.f32.mrf.mxu0
        %v2451 = vadd.f32 %v2190, %v2450
        %2452 = vmatmul.f32.gmra.mxu0 %v2245
        %v2453 = vpop.f32.mrf.mxu0
        %v2454 = vadd.f32 %v2190, %v2453
        %2455 = vmatmul.f32.gmra.mxu0 %v2248
        %v2456 = vpop.f32.mrf.mxu0
        %v2457 = vadd.f32 %v2190, %v2456
        %2458 = vmatmul.f32.gmra.mxu0 %v2251
        %v2459 = vpop.f32.mrf.mxu0
        %v2460 = vadd.f32 %v2190, %v2459
        %2461 = vmatmul.f32.gmra.mxu0 %v2254
        %v2462 = vpop.f32.mrf.mxu0
        %v2463 = vadd.f32 %v2190, %v2462
        %2464 = vmatmul.f32.gmra.mxu0 %v2257
        %v2465 = vpop.f32.mrf.mxu0
        %v2466 = vadd.f32 %v2190, %v2465
        %2467 = vmatmul.f32.gmra.mxu0 %v2260
        %v2468 = vpop.f32.mrf.mxu0
        %v2469 = vadd.f32 %v2190, %v2468
        %2470 = vmatmul.f32.gmra.mxu0 %v2263
        %v2471 = vpop.f32.mrf.mxu0
        %v2472 = vadd.f32 %v2190, %v2471
        %2473 = vmatmul.f32.gmra.mxu0 %v2266
        %v2474 = vpop.f32.mrf.mxu0
        %v2475 = vadd.f32 %v2190, %v2474
        %2476 = vmatmul.f32.gmra.mxu0 %v2269
        %v2477 = vpop.f32.mrf.mxu0
        %v2478 = vadd.f32 %v2190, %v2477
        %2479 = vmatmul.f32.gmra.mxu0 %v2272
        %v2480 = vpop.f32.mrf.mxu0
        %v2481 = vadd.f32 %v2190, %v2480
        %2482 = vmatmul.f32.gmra.mxu0 %v2275
        %v2483 = vpop.f32.mrf.mxu0
        %v2484 = vadd.f32 %v2190, %v2483
        %2485 = vmatmul.f32.gmra.mxu0 %v2278
        %v2486 = vpop.f32.mrf.mxu0
        %v2487 = vadd.f32 %v2190, %v2486
        %2488 = vmatmul.f32.gmra.mxu0 %v2281
        %v2489 = vpop.f32.mrf.mxu0
        %v2490 = vadd.f32 %v2190, %v2489
        %2491 = vmatmul.f32.gmra.mxu0 %v2284
        %v2492 = vpop.f32.mrf.mxu0
        %v2493 = vadd.f32 %v2190, %v2492
        %2494 = vmatmul.f32.gmra.mxu0 %v2287
        %v2495 = vpop.f32.mrf.mxu0
        %v2496 = vadd.f32 %v2190, %v2495
        %2497 = vmatmul.f32.gmra.mxu0 %v2290
        %v2498 = vpop.f32.mrf.mxu0
        %v2499 = vadd.f32 %v2190, %v2498
        %2500 = vmatmul.f32.gmra.mxu0 %v2293
        %v2501 = vpop.f32.mrf.mxu0
        %v2502 = vadd.f32 %v2190, %v2501
        %2503 = vmatmul.f32.gmra.mxu0 %v2296
        %v2504 = vpop.f32.mrf.mxu0
        %v2505 = vadd.f32 %v2190, %v2504
        %2506 = vmatmul.f32.gmra.mxu0 %v2299
        %v2507 = vpop.f32.mrf.mxu0
        %v2508 = vadd.f32 %v2190, %v2507
        %2509 = vmatmul.f32.gmra.mxu0 %v2302
        %v2510 = vpop.f32.mrf.mxu0
        %v2511 = vadd.f32 %v2190, %v2510
        %2512 = vmatmul.f32.gmra.mxu0 %v2305
        %v2513 = vpop.f32.mrf.mxu0
        %v2514 = vadd.f32 %v2190, %v2513
        %2515 = vmatmul.f32.gmra.mxu0 %v2308
        %v2516 = vpop.f32.mrf.mxu0
        %v2517 = vadd.f32 %v2190, %v2516
        %2518 = vmatmul.f32.gmra.mxu0 %v2311
        %v2519 = vpop.f32.mrf.mxu0
        %v2520 = vadd.f32 %v2190, %v2519
        %2521 = vmatmul.f32.gmra.mxu0 %v2314
        %v2522 = vpop.f32.mrf.mxu0
        %v2523 = vadd.f32 %v2190, %v2522
        %2524 = vmatmul.f32.gmra.mxu0 %v2317
        %v2525 = vpop.f32.mrf.mxu0
        %v2526 = vadd.f32 %v2190, %v2525
        %2527 = vmatmul.f32.gmra.mxu0 %v2320
        %v2528 = vpop.f32.mrf.mxu0
        %v2529 = vadd.f32 %v2190, %v2528
        %2530 = vmatmul.f32.gmra.mxu0 %v2323
        %v2531 = vpop.f32.mrf.mxu0
        %v2532 = vadd.f32 %v2190, %v2531
        %2533 = vmatmul.f32.gmra.mxu0 %v2326
        %v2534 = vpop.f32.mrf.mxu0
        %v2535 = vadd.f32 %v2190, %v2534
        %2536 = vmatmul.f32.gmra.mxu0 %v2329
        %v2537 = vpop.f32.mrf.mxu0
        %v2538 = vadd.f32 %v2190, %v2537
        %2539 = vmatmul.f32.gmra.mxu0 %v2332
        %v2540 = vpop.f32.mrf.mxu0
        %v2541 = vadd.f32 %v2190, %v2540
        %2542 = vmatmul.f32.gmra.mxu0 %v2335
        %v2543 = vpop.f32.mrf.mxu0
        %v2544 = vadd.f32 %v2190, %v2543
        %2545 = vmatmul.f32.gmra.mxu0 %v2338
        %v2546 = vpop.f32.mrf.mxu0
        %v2547 = vadd.f32 %v2190, %v2546
        %2548 = vmatmul.f32.gmra.mxu0 %v2341
        %v2549 = vpop.f32.mrf.mxu0
        %v2550 = vadd.f32 %v2190, %v2549
        %2551 = vmatmul.f32.gmra.mxu0 %v2344
        %v2552 = vpop.f32.mrf.mxu0
        %v2553 = vadd.f32 %v2190, %v2552
        %2554 = vmatmul.f32.gmra.mxu0 %v2347
        %v2555 = vpop.f32.mrf.mxu0
        %v2556 = vadd.f32 %v2190, %v2555
        %2557 = vmatmul.f32.gmra.mxu0 %v2350
        %v2558 = vpop.f32.mrf.mxu0
        %v2559 = vadd.f32 %v2190, %v2558
        %2560 = vmatmul.f32.gmra.mxu0 %v2353
        %v2561 = vpop.f32.mrf.mxu0
        %v2562 = vadd.f32 %v2190, %v2561
        %2563 = vmatmul.f32.gmra.mxu0 %v2356
        %v2564 = vpop.f32.mrf.mxu0
        %v2565 = vadd.f32 %v2190, %v2564
        %2566 = vmatmul.f32.gmra.mxu0 %v2359
        %v2567 = vpop.f32.mrf.mxu0
        %v2568 = vadd.f32 %v2190, %v2567
        %2569 = vmatmul.f32.gmra.mxu0 %v2362
        %v2570 = vpop.f32.mrf.mxu0
        %v2571 = vadd.f32 %v2190, %v2570
        %2572 = vmatmul.f32.gmra.mxu0 %v2365
        %v2573 = vpop.f32.mrf.mxu0
        %v2574 = vadd.f32 %v2190, %v2573
        %2575 = vmatmul.f32.gmra.mxu0 %v2368
        %v2576 = vpop.f32.mrf.mxu0
        %v2577 = vadd.f32 %v2190, %v2576
        %2578 = vmatmul.f32.gmra.mxu0 %v2371
        %v2579 = vpop.f32.mrf.mxu0
        %v2580 = vadd.f32 %v2190, %v2579
        %2581 = vmatmul.f32.gmra.mxu0 %v2374
        %v2582 = vpop.f32.mrf.mxu0
        %v2583 = vadd.f32 %v2190, %v2582
        %2584 = vmatmul.f32.gmra.mxu0 %v2377
        %v2585 = vpop.f32.mrf.mxu0
        %v2586 = vadd.f32 %v2190, %v2585
        %2587 = vmatmul.f32.gmra.mxu0 %v2380
        %v2588 = vpop.f32.mrf.mxu0
        %v2589 = vadd.f32 %v2190, %v2588
        %2590 = vmatmul.f32.gmra.mxu0 %v2383
        %v2591 = vpop.f32.mrf.mxu0
        %v2592 = vadd.f32 %v2190, %v2591
        %2593 = vdwg.mxu0
        %v2594 = vmax.f32 %v2403, 0.0
        %v2595 = vmax.f32 %v2406, 0.0
        %v2596 = vmax.f32 %v2409, 0.0
        %v2597 = vmax.f32 %v2412, 0.0
        %v2598 = vmax.f32 %v2415, 0.0
        %v2599 = vmax.f32 %v2418, 0.0
        %v2600 = vmax.f32 %v2421, 0.0
        %v2601 = vmax.f32 %v2424, 0.0
        %v2602 = vmax.f32 %v2427, 0.0
        %v2603 = vmax.f32 %v2430, 0.0
        %v2604 = vmax.f32 %v2433, 0.0
        %v2605 = vmax.f32 %v2436, 0.0
        %v2606 = vmax.f32 %v2439, 0.0
        %v2607 = vmax.f32 %v2442, 0.0
        %v2608 = vmax.f32 %v2445, 0.0
        %v2609 = vmax.f32 %v2448, 0.0
        %v2610 = vmax.f32 %v2451, 0.0
        %v2611 = vmax.f32 %v2454, 0.0
        %v2612 = vmax.f32 %v2457, 0.0
        %v2613 = vmax.f32 %v2460, 0.0
        %v2614 = vmax.f32 %v2463, 0.0
        %v2615 = vmax.f32 %v2466, 0.0
        %v2616 = vmax.f32 %v2469, 0.0
        %v2617 = vmax.f32 %v2472, 0.0
        %v2618 = vmax.f32 %v2475, 0.0
        %v2619 = vmax.f32 %v2478, 0.0
        %v2620 = vmax.f32 %v2481, 0.0
        %v2621 = vmax.f32 %v2484, 0.0
        %v2622 = vmax.f32 %v2487, 0.0
        %v2623 = vmax.f32 %v2490, 0.0
        %v2624 = vmax.f32 %v2493, 0.0
        %v2625 = vmax.f32 %v2496, 0.0
        %v2626 = vmax.f32 %v2499, 0.0
        %v2627 = vmax.f32 %v2502, 0.0
        %v2628 = vmax.f32 %v2505, 0.0
        %v2629 = vmax.f32 %v2508, 0.0
        %v2630 = vmax.f32 %v2511, 0.0
        %v2631 = vmax.f32 %v2514, 0.0
        %v2632 = vmax.f32 %v2517, 0.0
        %v2633 = vmax.f32 %v2520, 0.0
        %v2634 = vmax.f32 %v2523, 0.0
        %v2635 = vmax.f32 %v2526, 0.0
        %v2636 = vmax.f32 %v2529, 0.0
        %v2637 = vmax.f32 %v2532, 0.0
        %v2638 = vmax.f32 %v2535, 0.0
        %v2639 = vmax.f32 %v2538, 0.0
        %v2640 = vmax.f32 %v2541, 0.0
        %v2641 = vmax.f32 %v2544, 0.0
        %v2642 = vmax.f32 %v2547, 0.0
        %v2643 = vmax.f32 %v2550, 0.0
        %v2644 = vmax.f32 %v2553, 0.0
        %v2645 = vmax.f32 %v2556, 0.0
        %v2646 = vmax.f32 %v2559, 0.0
        %v2647 = vmax.f32 %v2562, 0.0
        %v2648 = vmax.f32 %v2565, 0.0
        %v2649 = vmax.f32 %v2568, 0.0
        %v2650 = vmax.f32 %v2571, 0.0
        %v2651 = vmax.f32 %v2574, 0.0
        %v2652 = vmax.f32 %v2577, 0.0
        %v2653 = vmax.f32 %v2580, 0.0
        %v2654 = vmax.f32 %v2583, 0.0
        %v2655 = vmax.f32 %v2586, 0.0
        %v2656 = vmax.f32 %v2589, 0.0
        %v2657 = vmax.f32 %v2592, 0.0
        %v2658 = vld [vmem:[%s7] sm:$0xff]
        %v2659 = vld [vmem:[%s7 + $0x8] sm:$0xff]
        %v2660 = vld [vmem:[%s7 + $0x10] sm:$0xff]
        %v2661 = vld [vmem:[%s7 + $0x18] sm:$0xff]
        %v2662 = vld [vmem:[%s8] sm:$0x1]
        %v2664 = vperm.slane %v2662, 0
        %v2667 = vsel %vm1714, %v2594, 0
        %v2670 = vsel %vm1714, %v2595, 0
        %v2673 = vsel %vm1714, %v2596, 0
        %v2676 = vsel %vm1714, %v2597, 0
        %v2679 = vsel %vm1714, %v2598, 0
        %v2682 = vsel %vm1714, %v2599, 0
        %v2685 = vsel %vm1714, %v2600, 0
        %v2688 = vsel %vm1714, %v2601, 0
        %v2691 = vsel %vm1714, %v2602, 0
        %v2694 = vsel %vm1714, %v2603, 0
        %v2697 = vsel %vm1714, %v2604, 0
        %v2700 = vsel %vm1714, %v2605, 0
        %v2703 = vsel %vm1714, %v2606, 0
        %v2706 = vsel %vm1714, %v2607, 0
        %v2709 = vsel %vm1714, %v2608, 0
        %v2712 = vsel %vm1714, %v2609, 0
        %v2715 = vsel %vm1714, %v2610, 0
        %v2718 = vsel %vm1714, %v2611, 0
        %v2721 = vsel %vm1714, %v2612, 0
        %v2724 = vsel %vm1714, %v2613, 0
        %v2727 = vsel %vm1714, %v2614, 0
        %v2730 = vsel %vm1714, %v2615, 0
        %v2733 = vsel %vm1714, %v2616, 0
        %v2736 = vsel %vm1714, %v2617, 0
        %v2739 = vsel %vm1714, %v2618, 0
        %v2742 = vsel %vm1714, %v2619, 0
        %v2745 = vsel %vm1714, %v2620, 0
        %v2748 = vsel %vm1714, %v2621, 0
        %v2751 = vsel %vm1714, %v2622, 0
        %v2754 = vsel %vm1714, %v2623, 0
        %v2757 = vsel %vm1714, %v2624, 0
        %v2760 = vsel %vm1714, %v2625, 0
        %v2763 = vsel %vm1714, %v2626, 0
        %v2766 = vsel %vm1714, %v2627, 0
        %v2769 = vsel %vm1714, %v2628, 0
        %v2772 = vsel %vm1714, %v2629, 0
        %v2775 = vsel %vm1714, %v2630, 0
        %v2778 = vsel %vm1714, %v2631, 0
        %v2781 = vsel %vm1714, %v2632, 0
        %v2784 = vsel %vm1714, %v2633, 0
        %v2787 = vsel %vm1714, %v2634, 0
        %v2790 = vsel %vm1714, %v2635, 0
        %v2793 = vsel %vm1714, %v2636, 0
        %v2796 = vsel %vm1714, %v2637, 0
        %v2799 = vsel %vm1714, %v2638, 0
        %v2802 = vsel %vm1714, %v2639, 0
        %v2805 = vsel %vm1714, %v2640, 0
        %v2808 = vsel %vm1714, %v2641, 0
        %v2811 = vsel %vm1714, %v2642, 0
        %v2814 = vsel %vm1714, %v2643, 0
        %v2817 = vsel %vm1714, %v2644, 0
        %v2820 = vsel %vm1714, %v2645, 0
        %v2823 = vsel %vm1714, %v2646, 0
        %v2826 = vsel %vm1714, %v2647, 0
        %v2829 = vsel %vm1714, %v2648, 0
        %v2832 = vsel %vm1714, %v2649, 0
        %v2835 = vsel %vm1714, %v2650, 0
        %v2838 = vsel %vm1714, %v2651, 0
        %v2841 = vsel %vm1714, %v2652, 0
        %v2844 = vsel %vm1714, %v2653, 0
        %v2847 = vsel %vm1714, %v2654, 0
        %v2850 = vsel %vm1714, %v2655, 0
        %v2853 = vsel %vm1714, %v2656, 0
        %v2856 = vsel %vm1714, %v2657, 0
        %2858 = vmatpush.msra.mxu0 0.0
        %2859 = vmatpush.msra.mxu0 0.0
        %2860 = vmatpush.msra.mxu0 0.0
        %2861 = vmatpush.msra.mxu0 0.0
        %2862 = vmatpush.msra.mxu0 0.0
        %2863 = vmatpush.msra.mxu0 0.0
        %2864 = vmatpush.msra.mxu0 0.0
        %2865 = vmatpush.msra.mxu0 0.0
        %2866 = vmatpush.msra.mxu0 0.0
        %2867 = vmatpush.msra.mxu0 0.0
        %2868 = vmatpush.msra.mxu0 0.0
        %2869 = vmatpush.msra.mxu0 0.0
        %2870 = vmatpush.msra.mxu0 %v2661
        %2871 = vmatpush.msra.mxu0 %v2660
        %2872 = vmatpush.msra.mxu0 %v2659
        %2873 = vmatpush.msra.mxu0 %v2658
        %2874 = vmatmul.f32.gmra.mxu0 %v2667
        %v2875 = vpop.f32.mrf.mxu0
        %v2876 = vadd.f32 %v2664, %v2875
        %2877 = vmatmul.f32.gmra.mxu0 %v2670
        %v2878 = vpop.f32.mrf.mxu0
        %v2879 = vadd.f32 %v2664, %v2878
        %2880 = vmatmul.f32.gmra.mxu0 %v2673
        %v2881 = vpop.f32.mrf.mxu0
        %v2882 = vadd.f32 %v2664, %v2881
        %2883 = vmatmul.f32.gmra.mxu0 %v2676
        %v2884 = vpop.f32.mrf.mxu0
        %v2885 = vadd.f32 %v2664, %v2884
        %2886 = vmatmul.f32.gmra.mxu0 %v2679
        %v2887 = vpop.f32.mrf.mxu0
        %v2888 = vadd.f32 %v2664, %v2887
        %2889 = vmatmul.f32.gmra.mxu0 %v2682
        %v2890 = vpop.f32.mrf.mxu0
        %v2891 = vadd.f32 %v2664, %v2890
        %2892 = vmatmul.f32.gmra.mxu0 %v2685
        %v2893 = vpop.f32.mrf.mxu0
        %v2894 = vadd.f32 %v2664, %v2893
        %2895 = vmatmul.f32.gmra.mxu0 %v2688
        %v2896 = vpop.f32.mrf.mxu0
        %v2897 = vadd.f32 %v2664, %v2896
        %2898 = vmatmul.f32.gmra.mxu0 %v2691
        %v2899 = vpop.f32.mrf.mxu0
        %v2900 = vadd.f32 %v2664, %v2899
        %2901 = vmatmul.f32.gmra.mxu0 %v2694
        %v2902 = vpop.f32.mrf.mxu0
        %v2903 = vadd.f32 %v2664, %v2902
        %2904 = vmatmul.f32.gmra.mxu0 %v2697
        %v2905 = vpop.f32.mrf.mxu0
        %v2906 = vadd.f32 %v2664, %v2905
        %2907 = vmatmul.f32.gmra.mxu0 %v2700
        %v2908 = vpop.f32.mrf.mxu0
        %v2909 = vadd.f32 %v2664, %v2908
        %2910 = vmatmul.f32.gmra.mxu0 %v2703
        %v2911 = vpop.f32.mrf.mxu0
        %v2912 = vadd.f32 %v2664, %v2911
        %2913 = vmatmul.f32.gmra.mxu0 %v2706
        %v2914 = vpop.f32.mrf.mxu0
        %v2915 = vadd.f32 %v2664, %v2914
        %2916 = vmatmul.f32.gmra.mxu0 %v2709
        %v2917 = vpop.f32.mrf.mxu0
        %v2918 = vadd.f32 %v2664, %v2917
        %2919 = vmatmul.f32.gmra.mxu0 %v2712
        %v2920 = vpop.f32.mrf.mxu0
        %v2921 = vadd.f32 %v2664, %v2920
        %2922 = vmatmul.f32.gmra.mxu0 %v2715
        %v2923 = vpop.f32.mrf.mxu0
        %v2924 = vadd.f32 %v2664, %v2923
        %2925 = vmatmul.f32.gmra.mxu0 %v2718
        %v2926 = vpop.f32.mrf.mxu0
        %v2927 = vadd.f32 %v2664, %v2926
        %2928 = vmatmul.f32.gmra.mxu0 %v2721
        %v2929 = vpop.f32.mrf.mxu0
        %v2930 = vadd.f32 %v2664, %v2929
        %2931 = vmatmul.f32.gmra.mxu0 %v2724
        %v2932 = vpop.f32.mrf.mxu0
        %v2933 = vadd.f32 %v2664, %v2932
        %2934 = vmatmul.f32.gmra.mxu0 %v2727
        %v2935 = vpop.f32.mrf.mxu0
        %v2936 = vadd.f32 %v2664, %v2935
        %2937 = vmatmul.f32.gmra.mxu0 %v2730
        %v2938 = vpop.f32.mrf.mxu0
        %v2939 = vadd.f32 %v2664, %v2938
        %2940 = vmatmul.f32.gmra.mxu0 %v2733
        %v2941 = vpop.f32.mrf.mxu0
        %v2942 = vadd.f32 %v2664, %v2941
        %2943 = vmatmul.f32.gmra.mxu0 %v2736
        %v2944 = vpop.f32.mrf.mxu0
        %v2945 = vadd.f32 %v2664, %v2944
        %2946 = vmatmul.f32.gmra.mxu0 %v2739
        %v2947 = vpop.f32.mrf.mxu0
        %v2948 = vadd.f32 %v2664, %v2947
        %2949 = vmatmul.f32.gmra.mxu0 %v2742
        %v2950 = vpop.f32.mrf.mxu0
        %v2951 = vadd.f32 %v2664, %v2950
        %2952 = vmatmul.f32.gmra.mxu0 %v2745
        %v2953 = vpop.f32.mrf.mxu0
        %v2954 = vadd.f32 %v2664, %v2953
        %2955 = vmatmul.f32.gmra.mxu0 %v2748
        %v2956 = vpop.f32.mrf.mxu0
        %v2957 = vadd.f32 %v2664, %v2956
        %2958 = vmatmul.f32.gmra.mxu0 %v2751
        %v2959 = vpop.f32.mrf.mxu0
        %v2960 = vadd.f32 %v2664, %v2959
        %2961 = vmatmul.f32.gmra.mxu0 %v2754
        %v2962 = vpop.f32.mrf.mxu0
        %v2963 = vadd.f32 %v2664, %v2962
        %2964 = vmatmul.f32.gmra.mxu0 %v2757
        %v2965 = vpop.f32.mrf.mxu0
        %v2966 = vadd.f32 %v2664, %v2965
        %2967 = vmatmul.f32.gmra.mxu0 %v2760
        %v2968 = vpop.f32.mrf.mxu0
        %v2969 = vadd.f32 %v2664, %v2968
        %2970 = vmatmul.f32.gmra.mxu0 %v2763
        %v2971 = vpop.f32.mrf.mxu0
        %v2972 = vadd.f32 %v2664, %v2971
        %2973 = vmatmul.f32.gmra.mxu0 %v2766
        %v2974 = vpop.f32.mrf.mxu0
        %v2975 = vadd.f32 %v2664, %v2974
        %2976 = vmatmul.f32.gmra.mxu0 %v2769
        %v2977 = vpop.f32.mrf.mxu0
        %v2978 = vadd.f32 %v2664, %v2977
        %2979 = vmatmul.f32.gmra.mxu0 %v2772
        %v2980 = vpop.f32.mrf.mxu0
        %v2981 = vadd.f32 %v2664, %v2980
        %2982 = vmatmul.f32.gmra.mxu0 %v2775
        %v2983 = vpop.f32.mrf.mxu0
        %v2984 = vadd.f32 %v2664, %v2983
        %2985 = vmatmul.f32.gmra.mxu0 %v2778
        %v2986 = vpop.f32.mrf.mxu0
        %v2987 = vadd.f32 %v2664, %v2986
        %2988 = vmatmul.f32.gmra.mxu0 %v2781
        %v2989 = vpop.f32.mrf.mxu0
        %v2990 = vadd.f32 %v2664, %v2989
        %2991 = vmatmul.f32.gmra.mxu0 %v2784
        %v2992 = vpop.f32.mrf.mxu0
        %v2993 = vadd.f32 %v2664, %v2992
        %2994 = vmatmul.f32.gmra.mxu0 %v2787
        %v2995 = vpop.f32.mrf.mxu0
        %v2996 = vadd.f32 %v2664, %v2995
        %2997 = vmatmul.f32.gmra.mxu0 %v2790
        %v2998 = vpop.f32.mrf.mxu0
        %v2999 = vadd.f32 %v2664, %v2998
        %3000 = vmatmul.f32.gmra.mxu0 %v2793
        %v3001 = vpop.f32.mrf.mxu0
        %v3002 = vadd.f32 %v2664, %v3001
        %3003 = vmatmul.f32.gmra.mxu0 %v2796
        %v3004 = vpop.f32.mrf.mxu0
        %v3005 = vadd.f32 %v2664, %v3004
        %3006 = vmatmul.f32.gmra.mxu0 %v2799
        %v3007 = vpop.f32.mrf.mxu0
        %v3008 = vadd.f32 %v2664, %v3007
        %3009 = vmatmul.f32.gmra.mxu0 %v2802
        %v3010 = vpop.f32.mrf.mxu0
        %v3011 = vadd.f32 %v2664, %v3010
        %3012 = vmatmul.f32.gmra.mxu0 %v2805
        %v3013 = vpop.f32.mrf.mxu0
        %v3014 = vadd.f32 %v2664, %v3013
        %3015 = vmatmul.f32.gmra.mxu0 %v2808
        %v3016 = vpop.f32.mrf.mxu0
        %v3017 = vadd.f32 %v2664, %v3016
        %3018 = vmatmul.f32.gmra.mxu0 %v2811
        %v3019 = vpop.f32.mrf.mxu0
        %v3020 = vadd.f32 %v2664, %v3019
        %3021 = vmatmul.f32.gmra.mxu0 %v2814
        %v3022 = vpop.f32.mrf.mxu0
        %v3023 = vadd.f32 %v2664, %v3022
        %3024 = vmatmul.f32.gmra.mxu0 %v2817
        %v3025 = vpop.f32.mrf.mxu0
        %v3026 = vadd.f32 %v2664, %v3025
        %3027 = vmatmul.f32.gmra.mxu0 %v2820
        %v3028 = vpop.f32.mrf.mxu0
        %v3029 = vadd.f32 %v2664, %v3028
        %3030 = vmatmul.f32.gmra.mxu0 %v2823
        %v3031 = vpop.f32.mrf.mxu0
        %v3032 = vadd.f32 %v2664, %v3031
        %3033 = vmatmul.f32.gmra.mxu0 %v2826
        %v3034 = vpop.f32.mrf.mxu0
        %v3035 = vadd.f32 %v2664, %v3034
        %3036 = vmatmul.f32.gmra.mxu0 %v2829
        %v3037 = vpop.f32.mrf.mxu0
        %v3038 = vadd.f32 %v2664, %v3037
        %3039 = vmatmul.f32.gmra.mxu0 %v2832
        %v3040 = vpop.f32.mrf.mxu0
        %v3041 = vadd.f32 %v2664, %v3040
        %3042 = vmatmul.f32.gmra.mxu0 %v2835
        %v3043 = vpop.f32.mrf.mxu0
        %v3044 = vadd.f32 %v2664, %v3043
        %3045 = vmatmul.f32.gmra.mxu0 %v2838
        %v3046 = vpop.f32.mrf.mxu0
        %v3047 = vadd.f32 %v2664, %v3046
        %3048 = vmatmul.f32.gmra.mxu0 %v2841
        %v3049 = vpop.f32.mrf.mxu0
        %v3050 = vadd.f32 %v2664, %v3049
        %3051 = vmatmul.f32.gmra.mxu0 %v2844
        %v3052 = vpop.f32.mrf.mxu0
        %v3053 = vadd.f32 %v2664, %v3052
        %3054 = vmatmul.f32.gmra.mxu0 %v2847
        %v3055 = vpop.f32.mrf.mxu0
        %v3056 = vadd.f32 %v2664, %v3055
        %3057 = vmatmul.f32.gmra.mxu0 %v2850
        %v3058 = vpop.f32.mrf.mxu0
        %v3059 = vadd.f32 %v2664, %v3058
        %3060 = vmatmul.f32.gmra.mxu0 %v2853
        %v3061 = vpop.f32.mrf.mxu0
        %v3062 = vadd.f32 %v2664, %v3061
        %3063 = vmatmul.f32.gmra.mxu0 %v2856
        %v3064 = vpop.f32.mrf.mxu0
        %v3065 = vadd.f32 %v2664, %v3064
        %3066 = vdwg.mxu0
        %vm3067 = vcmask 23552
        %3068 = vst.msk [vmem:[%s334] sm:$0xff] %vm3067, %v2876
        %3069 = vst.msk [vmem:[%s334 + $0x8] sm:$0xff] %vm3067, %v2879
        %3070 = vst.msk [vmem:[%s334 + $0x10] sm:$0xff] %vm3067, %v2882
        %3071 = vst.msk [vmem:[%s334 + $0x18] sm:$0xff] %vm3067, %v2885
        %3072 = vst.msk [vmem:[%s334 + $0x20] sm:$0xff] %vm3067, %v2888
        %3073 = vst.msk [vmem:[%s334 + $0x28] sm:$0xff] %vm3067, %v2891
        %3074 = vst.msk [vmem:[%s334 + $0x30] sm:$0xff] %vm3067, %v2894
        %3075 = vst.msk [vmem:[%s334 + $0x38] sm:$0xff] %vm3067, %v2897
        %3076 = vst.msk [vmem:[%s334 + $0x40] sm:$0xff] %vm3067, %v2900
        %3077 = vst.msk [vmem:[%s334 + $0x48] sm:$0xff] %vm3067, %v2903
        %3078 = vst.msk [vmem:[%s334 + $0x50] sm:$0xff] %vm3067, %v2906
        %3079 = vst.msk [vmem:[%s334 + $0x58] sm:$0xff] %vm3067, %v2909
        %3080 = vst.msk [vmem:[%s334 + $0x60] sm:$0xff] %vm3067, %v2912
        %3081 = vst.msk [vmem:[%s334 + $0x68] sm:$0xff] %vm3067, %v2915
        %3082 = vst.msk [vmem:[%s334 + $0x70] sm:$0xff] %vm3067, %v2918
        %3083 = vst.msk [vmem:[%s334 + $0x78] sm:$0xff] %vm3067, %v2921
        %3084 = vst.msk [vmem:[%s334 + $0x80] sm:$0xff] %vm3067, %v2924
        %3085 = vst.msk [vmem:[%s334 + $0x88] sm:$0xff] %vm3067, %v2927
        %3086 = vst.msk [vmem:[%s334 + $0x90] sm:$0xff] %vm3067, %v2930
        %3087 = vst.msk [vmem:[%s334 + $0x98] sm:$0xff] %vm3067, %v2933
        %3088 = vst.msk [vmem:[%s334 + $0xa0] sm:$0xff] %vm3067, %v2936
        %3089 = vst.msk [vmem:[%s334 + $0xa8] sm:$0xff] %vm3067, %v2939
        %3090 = vst.msk [vmem:[%s334 + $0xb0] sm:$0xff] %vm3067, %v2942
        %3091 = vst.msk [vmem:[%s334 + $0xb8] sm:$0xff] %vm3067, %v2945
        %3092 = vst.msk [vmem:[%s334 + $0xc0] sm:$0xff] %vm3067, %v2948
        %3093 = vst.msk [vmem:[%s334 + $0xc8] sm:$0xff] %vm3067, %v2951
        %3094 = vst.msk [vmem:[%s334 + $0xd0] sm:$0xff] %vm3067, %v2954
        %3095 = vst.msk [vmem:[%s334 + $0xd8] sm:$0xff] %vm3067, %v2957
        %3096 = vst.msk [vmem:[%s334 + $0xe0] sm:$0xff] %vm3067, %v2960
        %3097 = vst.msk [vmem:[%s334 + $0xe8] sm:$0xff] %vm3067, %v2963
        %3098 = vst.msk [vmem:[%s334 + $0xf0] sm:$0xff] %vm3067, %v2966
        %3099 = vst.msk [vmem:[%s334 + $0xf8] sm:$0xff] %vm3067, %v2969
        %3100 = vst.msk [vmem:[%s334 + $0x100] sm:$0xff] %vm3067, %v2972
        %3101 = vst.msk [vmem:[%s334 + $0x108] sm:$0xff] %vm3067, %v2975
        %3102 = vst.msk [vmem:[%s334 + $0x110] sm:$0xff] %vm3067, %v2978
        %3103 = vst.msk [vmem:[%s334 + $0x118] sm:$0xff] %vm3067, %v2981
        %3104 = vst.msk [vmem:[%s334 + $0x120] sm:$0xff] %vm3067, %v2984
        %3105 = vst.msk [vmem:[%s334 + $0x128] sm:$0xff] %vm3067, %v2987
        %3106 = vst.msk [vmem:[%s334 + $0x130] sm:$0xff] %vm3067, %v2990
        %3107 = vst.msk [vmem:[%s334 + $0x138] sm:$0xff] %vm3067, %v2993
        %3108 = vst.msk [vmem:[%s334 + $0x140] sm:$0xff] %vm3067, %v2996
        %3109 = vst.msk [vmem:[%s334 + $0x148] sm:$0xff] %vm3067, %v2999
        %3110 = vst.msk [vmem:[%s334 + $0x150] sm:$0xff] %vm3067, %v3002
        %3111 = vst.msk [vmem:[%s334 + $0x158] sm:$0xff] %vm3067, %v3005
        %3112 = vst.msk [vmem:[%s334 + $0x160] sm:$0xff] %vm3067, %v3008
        %3113 = vst.msk [vmem:[%s334 + $0x168] sm:$0xff] %vm3067, %v3011
        %3114 = vst.msk [vmem:[%s334 + $0x170] sm:$0xff] %vm3067, %v3014
        %3115 = vst.msk [vmem:[%s334 + $0x178] sm:$0xff] %vm3067, %v3017
        %3116 = vst.msk [vmem:[%s334 + $0x180] sm:$0xff] %vm3067, %v3020
        %3117 = vst.msk [vmem:[%s334 + $0x188] sm:$0xff] %vm3067, %v3023
        %3118 = vst.msk [vmem:[%s334 + $0x190] sm:$0xff] %vm3067, %v3026
        %3119 = vst.msk [vmem:[%s334 + $0x198] sm:$0xff] %vm3067, %v3029
        %3120 = vst.msk [vmem:[%s334 + $0x1a0] sm:$0xff] %vm3067, %v3032
        %3121 = vst.msk [vmem:[%s334 + $0x1a8] sm:$0xff] %vm3067, %v3035
        %3122 = vst.msk [vmem:[%s334 + $0x1b0] sm:$0xff] %vm3067, %v3038
        %3123 = vst.msk [vmem:[%s334 + $0x1b8] sm:$0xff] %vm3067, %v3041
        %3124 = vst.msk [vmem:[%s334 + $0x1c0] sm:$0xff] %vm3067, %v3044
        %3125 = vst.msk [vmem:[%s334 + $0x1c8] sm:$0xff] %vm3067, %v3047
        %3126 = vst.msk [vmem:[%s334 + $0x1d0] sm:$0xff] %vm3067, %v3050
        %3127 = vst.msk [vmem:[%s334 + $0x1d8] sm:$0xff] %vm3067, %v3053
        %3128 = vst.msk [vmem:[%s334 + $0x1e0] sm:$0xff] %vm3067, %v3056
        %3129 = vst.msk [vmem:[%s334 + $0x1e8] sm:$0xff] %vm3067, %v3059
        %3130 = vst.msk [vmem:[%s334 + $0x1f0] sm:$0xff] %vm3067, %v3062
        %3131 = vst.msk [vmem:[%s334 + $0x1f8] sm:$0xff] %vm3067, %v3065
        %s3132 = sand.u32 %s222, 1
        %s3133 = sand.u32 %s222, 1
        %s3134 = smul.addr %s3133, 512
        %s3135 = scalar_lea.vmem [#allocation2], %s3134
        // Predicated region
        $region57: #{tpu_custom_call.1} parent=55 // pred_check
          %p3136 = pneg %p232
        $region58: #{tpu_custom_call.1} parent=55 // pred_check_branch
          %3138 = sbr.rel (%p3136) target = $region60
        $region59: #{tpu_custom_call.1} parent=55 // pred_region
          %s3139 = smul.u32 64, %s20
          %s3140 = ssub.s32 125, %s3139
          %p3141 = scmp.lt.s32.totalorder %s3140, 64
          %s3142 = scalar_select %p3141, %s3140, 64
          %s3143 = smul.u32 8, %s3142
          %p3144 = scmp.ne.s32.totalorder 0, %s3143
          %s3145 = smul.addr %s3139, 8
          %s3146 = scalar_lea.vmem %s9, %s3145
          // Predicated region
          $region61: #{tpu_custom_call.1} parent=59 // pred_check
            %p3147 = pneg %p3144
          $region62: #{tpu_custom_call.1} parent=59 // pred_check_branch
            %3149 = sbr.rel (%p3147) target = $region64
          $region63: #{tpu_custom_call.1} parent=59 // pred_region
            // Predicated region
            $region65: #{tpu_custom_call.1} parent=63 // pred_check
              _
            $region66: #{tpu_custom_call.1} parent=63 // pred_check_branch
              %3151 = sbr.rel (0) target = $region68
            $region67: #{tpu_custom_call.1} parent=63 // pred_region
              // Predicated region
              $region87: #{tpu_custom_call.1} parent=67 // pred_check
                _
              $region88: #{tpu_custom_call.1} parent=67 // pred_check_branch
                %3263 = sbr.rel (0) target = $region90
              $region89: #{tpu_custom_call.1} parent=67 // pred_region
                %s3264 = sshrl.u32 %s3142, 5
                // While loop
                $region91: #{tpu_custom_call.1} parent=89 // loop_pre_header
                  _
                $region92: #{tpu_custom_call.1} parent=89 // loop_header
                  %s3266 = sphi 0, %s3268
                  %p3267 = scmp.ge.s32.totalorder %s3266, %s3264
                  %s3271 = sphi 0, %s3340
                  %s3272 = sphi %s3135, %s3343
                  %s3273 = sphi %s3146, %s3344
                $region93: #{tpu_custom_call.1} parent=89 // loop_header_branch
                  %3270 = sbr.rel (%p3267) target = $region97
                $region94: #{tpu_custom_call.1} parent=89 // loop_body
                  %v3274 = vld [vmem:[%s3272] sm:$0xff]
                  %3275 = vst [vmem:[%s3273] sm:$0xff] %v3274
                  %v3276 = vld [vmem:[%s3272 + $0x8] sm:$0xff]
                  %3277 = vst [vmem:[%s3273 + $0x8] sm:$0xff] %v3276
                  %v3278 = vld [vmem:[%s3272 + $0x10] sm:$0xff]
                  %3279 = vst [vmem:[%s3273 + $0x10] sm:$0xff] %v3278
                  %v3280 = vld [vmem:[%s3272 + $0x18] sm:$0xff]
                  %3281 = vst [vmem:[%s3273 + $0x18] sm:$0xff] %v3280
                  %v3282 = vld [vmem:[%s3272 + $0x20] sm:$0xff]
                  %3283 = vst [vmem:[%s3273 + $0x20] sm:$0xff] %v3282
                  %v3284 = vld [vmem:[%s3272 + $0x28] sm:$0xff]
                  %3285 = vst [vmem:[%s3273 + $0x28] sm:$0xff] %v3284
                  %v3286 = vld [vmem:[%s3272 + $0x30] sm:$0xff]
                  %3287 = vst [vmem:[%s3273 + $0x30] sm:$0xff] %v3286
                  %v3288 = vld [vmem:[%s3272 + $0x38] sm:$0xff]
                  %3289 = vst [vmem:[%s3273 + $0x38] sm:$0xff] %v3288
                  %v3290 = vld [vmem:[%s3272 + $0x40] sm:$0xff]
                  %3291 = vst [vmem:[%s3273 + $0x40] sm:$0xff] %v3290
                  %v3292 = vld [vmem:[%s3272 + $0x48] sm:$0xff]
                  %3293 = vst [vmem:[%s3273 + $0x48] sm:$0xff] %v3292
                  %v3294 = vld [vmem:[%s3272 + $0x50] sm:$0xff]
                  %3295 = vst [vmem:[%s3273 + $0x50] sm:$0xff] %v3294
                  %v3296 = vld [vmem:[%s3272 + $0x58] sm:$0xff]
                  %3297 = vst [vmem:[%s3273 + $0x58] sm:$0xff] %v3296
                  %v3298 = vld [vmem:[%s3272 + $0x60] sm:$0xff]
                  %3299 = vst [vmem:[%s3273 + $0x60] sm:$0xff] %v3298
                  %v3300 = vld [vmem:[%s3272 + $0x68] sm:$0xff]
                  %3301 = vst [vmem:[%s3273 + $0x68] sm:$0xff] %v3300
                  %v3302 = vld [vmem:[%s3272 + $0x70] sm:$0xff]
                  %3303 = vst [vmem:[%s3273 + $0x70] sm:$0xff] %v3302
                  %v3304 = vld [vmem:[%s3272 + $0x78] sm:$0xff]
                  %3305 = vst [vmem:[%s3273 + $0x78] sm:$0xff] %v3304
                  %v3306 = vld [vmem:[%s3272 + $0x80] sm:$0xff]
                  %3307 = vst [vmem:[%s3273 + $0x80] sm:$0xff] %v3306
                  %v3308 = vld [vmem:[%s3272 + $0x88] sm:$0xff]
                  %3309 = vst [vmem:[%s3273 + $0x88] sm:$0xff] %v3308
                  %v3310 = vld [vmem:[%s3272 + $0x90] sm:$0xff]
                  %3311 = vst [vmem:[%s3273 + $0x90] sm:$0xff] %v3310
                  %v3312 = vld [vmem:[%s3272 + $0x98] sm:$0xff]
                  %3313 = vst [vmem:[%s3273 + $0x98] sm:$0xff] %v3312
                  %v3314 = vld [vmem:[%s3272 + $0xa0] sm:$0xff]
                  %3315 = vst [vmem:[%s3273 + $0xa0] sm:$0xff] %v3314
                  %v3316 = vld [vmem:[%s3272 + $0xa8] sm:$0xff]
                  %3317 = vst [vmem:[%s3273 + $0xa8] sm:$0xff] %v3316
                  %v3318 = vld [vmem:[%s3272 + $0xb0] sm:$0xff]
                  %3319 = vst [vmem:[%s3273 + $0xb0] sm:$0xff] %v3318
                  %v3320 = vld [vmem:[%s3272 + $0xb8] sm:$0xff]
                  %3321 = vst [vmem:[%s3273 + $0xb8] sm:$0xff] %v3320
                  %v3322 = vld [vmem:[%s3272 + $0xc0] sm:$0xff]
                  %3323 = vst [vmem:[%s3273 + $0xc0] sm:$0xff] %v3322
                  %v3324 = vld [vmem:[%s3272 + $0xc8] sm:$0xff]
                  %3325 = vst [vmem:[%s3273 + $0xc8] sm:$0xff] %v3324
                  %v3326 = vld [vmem:[%s3272 + $0xd0] sm:$0xff]
                  %3327 = vst [vmem:[%s3273 + $0xd0] sm:$0xff] %v3326
                  %v3328 = vld [vmem:[%s3272 + $0xd8] sm:$0xff]
                  %3329 = vst [vmem:[%s3273 + $0xd8] sm:$0xff] %v3328
                  %v3330 = vld [vmem:[%s3272 + $0xe0] sm:$0xff]
                  %3331 = vst [vmem:[%s3273 + $0xe0] sm:$0xff] %v3330
                  %v3332 = vld [vmem:[%s3272 + $0xe8] sm:$0xff]
                  %3333 = vst [vmem:[%s3273 + $0xe8] sm:$0xff] %v3332
                  %v3334 = vld [vmem:[%s3272 + $0xf0] sm:$0xff]
                  %3335 = vst [vmem:[%s3273 + $0xf0] sm:$0xff] %v3334
                  %v3336 = vld [vmem:[%s3272 + $0xf8] sm:$0xff]
                  %3337 = vst [vmem:[%s3273 + $0xf8] sm:$0xff] %v3336
                  %s3338 = sadd.s32 1, %s3271
                  %p3339 = scmp.ge.s32.totalorder %s3338, %s3264
                  %s3340 = scalar_select %p3339, 0, %s3338
                  %s3341 = smul.u32 %s3340, 256
                  %s3342 = smul.u32 %s3340, 256
                  %s3343 = scalar_lea.vmem %s3135, %s3341 [#allocation2]
                  %s3344 = scalar_lea.vmem %s3146, %s3342
                $region95: #{tpu_custom_call.1} parent=89 // loop_footer
                  %s3268 = sadd.s32 %s3266, 1
                $region96: #{tpu_custom_call.1} parent=89 // loop_footer_branch
                  %3265 = sbr.rel target = $region92
                $region97: #{tpu_custom_call.1} parent=89 // loop_exit
                  _
                %s3345 = sshrl.u32 %s3142, 5
                %s3346 = sand.u32 %s3142, 31
                %s3347 = smul.u32 %s3345, 32
                %s3348 = smul.u32 8, %s3347
                %s3349 = scalar_lea.vmem %s3135, %s3348 [#allocation2]
                %s3350 = smul.u32 8, %s3347
                %s3351 = scalar_lea.vmem %s3146, %s3350
                // While loop
                $region98: #{tpu_custom_call.1} parent=89 // loop_pre_header
                  _
                $region99: #{tpu_custom_call.1} parent=89 // loop_header
                  %s3353 = sphi 0, %s3355
                  %p3354 = scmp.ge.s32.totalorder %s3353, %s3346
                  %s3358 = sphi 0, %s3365
                  %s3359 = sphi %s3349, %s3368
                  %s3360 = sphi %s3351, %s3369
                $region100: #{tpu_custom_call.1} parent=89 // loop_header_branch
                  %3357 = sbr.rel (%p3354) target = $region104
                $region101: #{tpu_custom_call.1} parent=89 // loop_body
                  %v3361 = vld [vmem:[%s3359] sm:$0xff]
                  %3362 = vst [vmem:[%s3360] sm:$0xff] %v3361
                  %s3363 = sadd.s32 1, %s3358
                  %p3364 = scmp.ge.s32.totalorder %s3363, %s3346
                  %s3365 = scalar_select %p3364, 0, %s3363
                  %s3366 = smul.u32 %s3365, 8
                  %s3367 = smul.u32 %s3365, 8
                  %s3368 = scalar_lea.vmem %s3349, %s3366 [#allocation2]
                  %s3369 = scalar_lea.vmem %s3351, %s3367
                $region102: #{tpu_custom_call.1} parent=89 // loop_footer
                  %s3355 = sadd.s32 %s3353, 1
                $region103: #{tpu_custom_call.1} parent=89 // loop_footer_branch
                  %3352 = sbr.rel target = $region99
                $region104: #{tpu_custom_call.1} parent=89 // loop_exit
                  _
              $region90: #{tpu_custom_call.1} parent=67 // pred_fallthru
                _
              // Predicated region
              $region105: #{tpu_custom_call.1} parent=67 // pred_check
                _
              $region106: #{tpu_custom_call.1} parent=67 // pred_check_branch
                %3371 = sbr.rel target = $region108
              $region107: #{tpu_custom_call.1} parent=67 // pred_region
                _
              $region108: #{tpu_custom_call.1} parent=67 // pred_fallthru
                _
            $region68: #{tpu_custom_call.1} parent=63 // pred_fallthru
              _
            // Predicated region
            $region69: #{tpu_custom_call.1} parent=63 // pred_check
              _
            $region70: #{tpu_custom_call.1} parent=63 // pred_check_branch
              %3153 = sbr.rel target = $region72
            $region71: #{tpu_custom_call.1} parent=63 // pred_region
              %s3155 = ssub.s32 256, 1
              %s3156 = sshrl.u32 %s3142, 5
              // While loop
              $region73: #{tpu_custom_call.1} parent=71 // loop_pre_header
                _
              $region74: #{tpu_custom_call.1} parent=71 // loop_header
                %s3158 = sphi 0, %s3160
                %p3159 = scmp.ge.s32.totalorder %s3158, %s3156
                %s3163 = sphi 0, %s3232
                %s3164 = sphi %s3135, %s3235
                %s3165 = sphi %s3146, %s3236
              $region75: #{tpu_custom_call.1} parent=71 // loop_header_branch
                %3162 = sbr.rel (%p3159) target = $region79
              $region76: #{tpu_custom_call.1} parent=71 // loop_body
                %v3166 = vld [vmem:[%s3164] sm:%s3155]
                %3167 = vst [vmem:[%s3165] sm:%s3155] %v3166
                %v3168 = vld [vmem:[%s3164 + $0x8] sm:%s3155]
                %3169 = vst [vmem:[%s3165 + $0x8] sm:%s3155] %v3168
                %v3170 = vld [vmem:[%s3164 + $0x10] sm:%s3155]
                %3171 = vst [vmem:[%s3165 + $0x10] sm:%s3155] %v3170
                %v3172 = vld [vmem:[%s3164 + $0x18] sm:%s3155]
                %3173 = vst [vmem:[%s3165 + $0x18] sm:%s3155] %v3172
                %v3174 = vld [vmem:[%s3164 + $0x20] sm:%s3155]
                %3175 = vst [vmem:[%s3165 + $0x20] sm:%s3155] %v3174
                %v3176 = vld [vmem:[%s3164 + $0x28] sm:%s3155]
                %3177 = vst [vmem:[%s3165 + $0x28] sm:%s3155] %v3176
                %v3178 = vld [vmem:[%s3164 + $0x30] sm:%s3155]
                %3179 = vst [vmem:[%s3165 + $0x30] sm:%s3155] %v3178
                %v3180 = vld [vmem:[%s3164 + $0x38] sm:%s3155]
                %3181 = vst [vmem:[%s3165 + $0x38] sm:%s3155] %v3180
                %v3182 = vld [vmem:[%s3164 + $0x40] sm:%s3155]
                %3183 = vst [vmem:[%s3165 + $0x40] sm:%s3155] %v3182
                %v3184 = vld [vmem:[%s3164 + $0x48] sm:%s3155]
                %3185 = vst [vmem:[%s3165 + $0x48] sm:%s3155] %v3184
                %v3186 = vld [vmem:[%s3164 + $0x50] sm:%s3155]
                %3187 = vst [vmem:[%s3165 + $0x50] sm:%s3155] %v3186
                %v3188 = vld [vmem:[%s3164 + $0x58] sm:%s3155]
                %3189 = vst [vmem:[%s3165 + $0x58] sm:%s3155] %v3188
                %v3190 = vld [vmem:[%s3164 + $0x60] sm:%s3155]
                %3191 = vst [vmem:[%s3165 + $0x60] sm:%s3155] %v3190
                %v3192 = vld [vmem:[%s3164 + $0x68] sm:%s3155]
                %3193 = vst [vmem:[%s3165 + $0x68] sm:%s3155] %v3192
                %v3194 = vld [vmem:[%s3164 + $0x70] sm:%s3155]
                %3195 = vst [vmem:[%s3165 + $0x70] sm:%s3155] %v3194
                %v3196 = vld [vmem:[%s3164 + $0x78] sm:%s3155]
                %3197 = vst [vmem:[%s3165 + $0x78] sm:%s3155] %v3196
                %v3198 = vld [vmem:[%s3164 + $0x80] sm:%s3155]
                %3199 = vst [vmem:[%s3165 + $0x80] sm:%s3155] %v3198
                %v3200 = vld [vmem:[%s3164 + $0x88] sm:%s3155]
                %3201 = vst [vmem:[%s3165 + $0x88] sm:%s3155] %v3200
                %v3202 = vld [vmem:[%s3164 + $0x90] sm:%s3155]
                %3203 = vst [vmem:[%s3165 + $0x90] sm:%s3155] %v3202
                %v3204 = vld [vmem:[%s3164 + $0x98] sm:%s3155]
                %3205 = vst [vmem:[%s3165 + $0x98] sm:%s3155] %v3204
                %v3206 = vld [vmem:[%s3164 + $0xa0] sm:%s3155]
                %3207 = vst [vmem:[%s3165 + $0xa0] sm:%s3155] %v3206
                %v3208 = vld [vmem:[%s3164 + $0xa8] sm:%s3155]
                %3209 = vst [vmem:[%s3165 + $0xa8] sm:%s3155] %v3208
                %v3210 = vld [vmem:[%s3164 + $0xb0] sm:%s3155]
                %3211 = vst [vmem:[%s3165 + $0xb0] sm:%s3155] %v3210
                %v3212 = vld [vmem:[%s3164 + $0xb8] sm:%s3155]
                %3213 = vst [vmem:[%s3165 + $0xb8] sm:%s3155] %v3212
                %v3214 = vld [vmem:[%s3164 + $0xc0] sm:%s3155]
                %3215 = vst [vmem:[%s3165 + $0xc0] sm:%s3155] %v3214
                %v3216 = vld [vmem:[%s3164 + $0xc8] sm:%s3155]
                %3217 = vst [vmem:[%s3165 + $0xc8] sm:%s3155] %v3216
                %v3218 = vld [vmem:[%s3164 + $0xd0] sm:%s3155]
                %3219 = vst [vmem:[%s3165 + $0xd0] sm:%s3155] %v3218
                %v3220 = vld [vmem:[%s3164 + $0xd8] sm:%s3155]
                %3221 = vst [vmem:[%s3165 + $0xd8] sm:%s3155] %v3220
                %v3222 = vld [vmem:[%s3164 + $0xe0] sm:%s3155]
                %3223 = vst [vmem:[%s3165 + $0xe0] sm:%s3155] %v3222
                %v3224 = vld [vmem:[%s3164 + $0xe8] sm:%s3155]
                %3225 = vst [vmem:[%s3165 + $0xe8] sm:%s3155] %v3224
                %v3226 = vld [vmem:[%s3164 + $0xf0] sm:%s3155]
                %3227 = vst [vmem:[%s3165 + $0xf0] sm:%s3155] %v3226
                %v3228 = vld [vmem:[%s3164 + $0xf8] sm:%s3155]
                %3229 = vst [vmem:[%s3165 + $0xf8] sm:%s3155] %v3228
                %s3230 = sadd.s32 1, %s3163
                %p3231 = scmp.ge.s32.totalorder %s3230, %s3156
                %s3232 = scalar_select %p3231, 0, %s3230
                %s3233 = smul.u32 %s3232, 256
                %s3234 = smul.u32 %s3232, 256
                %s3235 = scalar_lea.vmem %s3135, %s3233 [#allocation2]
                %s3236 = scalar_lea.vmem %s3146, %s3234
              $region77: #{tpu_custom_call.1} parent=71 // loop_footer
                %s3160 = sadd.s32 %s3158, 1
              $region78: #{tpu_custom_call.1} parent=71 // loop_footer_branch
                %3157 = sbr.rel target = $region74
              $region79: #{tpu_custom_call.1} parent=71 // loop_exit
                _
              %s3237 = sshrl.u32 %s3142, 5
              %s3238 = sand.u32 %s3142, 31
              %s3239 = smul.u32 %s3237, 32
              %s3240 = smul.u32 8, %s3239
              %s3241 = scalar_lea.vmem %s3135, %s3240 [#allocation2]
              %s3242 = smul.u32 8, %s3239
              %s3243 = scalar_lea.vmem %s3146, %s3242
              // While loop
              $region80: #{tpu_custom_call.1} parent=71 // loop_pre_header
                _
              $region81: #{tpu_custom_call.1} parent=71 // loop_header
                %s3245 = sphi 0, %s3247
                %p3246 = scmp.ge.s32.totalorder %s3245, %s3238
                %s3250 = sphi 0, %s3257
                %s3251 = sphi %s3241, %s3260
                %s3252 = sphi %s3243, %s3261
              $region82: #{tpu_custom_call.1} parent=71 // loop_header_branch
                %3249 = sbr.rel (%p3246) target = $region86
              $region83: #{tpu_custom_call.1} parent=71 // loop_body
                %v3253 = vld [vmem:[%s3251] sm:%s3155]
                %3254 = vst [vmem:[%s3252] sm:%s3155] %v3253
                %s3255 = sadd.s32 1, %s3250
                %p3256 = scmp.ge.s32.totalorder %s3255, %s3238
                %s3257 = scalar_select %p3256, 0, %s3255
                %s3258 = smul.u32 %s3257, 8
                %s3259 = smul.u32 %s3257, 8
                %s3260 = scalar_lea.vmem %s3241, %s3258 [#allocation2]
                %s3261 = scalar_lea.vmem %s3243, %s3259
              $region84: #{tpu_custom_call.1} parent=71 // loop_footer
                %s3247 = sadd.s32 %s3245, 1
              $region85: #{tpu_custom_call.1} parent=71 // loop_footer_branch
                %3244 = sbr.rel target = $region81
              $region86: #{tpu_custom_call.1} parent=71 // loop_exit
                _
            $region72: #{tpu_custom_call.1} parent=63 // pred_fallthru
              _
          $region64: #{tpu_custom_call.1} parent=59 // pred_fallthru
            _
          %3372 = vnop
        $region60: #{tpu_custom_call.1} parent=55 // pred_fallthru
          _
      $region56: #{tpu_custom_call.1} parent=5 // pred_fallthru
        _
      %p3373 = scmp.le.s32.totalorder 2, %s15
      // Predicated region
      $region109: #{tpu_custom_call.1} parent=5 // pred_check
        %p3374 = pneg %p3373
      $region110: #{tpu_custom_call.1} parent=5 // pred_check_branch
        %3376 = sbr.rel (%p3374) target = $region112
      $region111: #{tpu_custom_call.1} parent=5 // pred_region
        %s3377 = ssub.s32 %s15, 2
        // Predicated region
        $region113: #{tpu_custom_call.1} parent=111 // pred_check
          %p3378 = pneg %p238
        $region114: #{tpu_custom_call.1} parent=111 // pred_check_branch
          %3380 = sbr.rel (%p3378) target = $region116
        $region115: #{tpu_custom_call.1} parent=111 // pred_region
          %s3381 = sand.u32 %s223, 1
          %s3382 = sand.u32 %s223, 1
          %s3383 = smul.addr %s3382, 512
          %s3384 = scalar_lea.vmem [#allocation2], %s3383
        $region116: #{tpu_custom_call.1} parent=111 // pred_fallthru
          _
      $region112: #{tpu_custom_call.1} parent=5 // pred_fallthru
        _
    $region6: #{tpu_custom_call.1} parent=1 // loop_footer
      %s19 = sadd.s32 1, %s15
    $region7: #{tpu_custom_call.1} parent=1 // loop_footer_branch
      %14 = sbr.rel target = $region3
    $region8: #{tpu_custom_call.1} parent=1 // loop_exit
      _

</llo_original>
